<compile_context>
chip_gen: v6e
topology: v6e:2x2x1
jax: 0.10.0
libtpu: 0.0.40
codegen_flags: <defaults>
</compile_context>

<pallas_src>
import functools

import numpy as np
import jax
import jax.numpy as jnp
from jax.experimental import pallas as pl
from jax.experimental.pallas import tpu as pltpu

FILTERS = [64, 128, 256, 512, 1024]
CAT_CH = FILTERS[0]            # 64
UP_CH = 5 * CAT_CH             # 320 (upsample_channels)

_BF16 = jnp.bfloat16

# Tiling targets (sized for v7x's 32 MiB default scoped VMEM; fit v5e/v6e too).
CONV_ROW_TARGET = 2048            # flattened output rows per conv tile
CONV_W_BYTES_BUDGET = 4 << 20     # resident bf16 weight block budget
POOL_ELEMS_BUDGET = 1 << 20       # input elements per maxpool block
UPS_LANE_TARGET = 2048            # lane width per row-interp tile
CONV1X1_ROW_TARGET = 4096


def _pick_tile(n, limit, multiple_of=1):
    """Largest divisor of n that is <= limit and a multiple of `multiple_of`.
    Falls back to n (full extent, always a legal block size)."""
    limit = max(1, min(n, limit))
    for d in range(limit, 0, -1):
        if n % d == 0 and d % multiple_of == 0:
            return d
    return n


# ----------------------------------------------------------------------------
# Pallas kernels
# ----------------------------------------------------------------------------
def _conv3x3_kernel(x_ref, w_ref, scale_ref, shift_ref, o_ref, acc_ref, *,
                    wp, mo, relu):
    """x_ref: (1, MP, Cin) flattened padded row-tile (row stride = wp = W+2).
    Tap (dh, dw) of the 3x3 stencil is the constant row shift dh*wp+dw, so the
    whole conv is 9 shifted-slice matmuls accumulated in f32 VMEM scratch."""
    for idx in range(9):
        dh, dw = idx // 3, idx % 3
        tap = x_ref[0, pl.ds(dh * wp + dw, mo), :]            # (MO, Cin) bf16
        part = jnp.dot(tap, w_ref[idx], preferred_element_type=jnp.float32)
        if idx == 0:
            acc_ref[...] = part
        else:
            acc_ref[...] += part
    y = acc_ref[...] * scale_ref[...] + shift_ref[...]        # folded BN (f32)
    if relu:
        y = jnp.maximum(y, 0.0)
    o_ref[0] = y.astype(o_ref.dtype)


def _maxpool_kernel(x_ref, o_ref, *, k, c):
    """x_ref: (1, tile_ho, k, Wo, k*C); reduce over the k row-taps (major axis)
    and the k column-taps (lane slices of width C)."""
    v = x_ref[0]
    m = v[:, 0]
    for i in range(1, k):
        m = jnp.maximum(m, v[:, i])
    r = m[..., 0:c]
    for j in range(1, k):
        r = jnp.maximum(r, m[..., j * c:(j + 1) * c])
    o_ref[0] = r


def _upsample_rows_kernel(r_ref, x_ref, o_ref):
    """H interpolation: (Ho, Hi) @ (Hi, tile_wc)."""
    o_ref[0] = jnp.dot(r_ref[...], x_ref[0],
                       preferred_element_type=jnp.float32).astype(o_ref.dtype)


def _upsample_cols_kernel(c_ref, x_ref, o_ref, *, tile_h):
    """W interpolation per output row: (Wo, Wi) @ (Wi, C)."""
    cw = c_ref[...]
    for t in range(tile_h):
        o_ref[0, t] = jnp.dot(cw, x_ref[0, t],
                              preferred_element_type=jnp.float32).astype(o_ref.dtype)


def _conv1x1_sig_kernel(x_ref, w_ref, b_ref, o_ref):
    y = jnp.dot(x_ref[...], w_ref[...],
                preferred_element_type=jnp.float32) + b_ref[...]
    o_ref[...] = 1.0 / (1.0 + jnp.exp(-y))


# ----------------------------------------------------------------------------
# Pallas-backed ops
# ----------------------------------------------------------------------------
def conv3x3_bn_relu(x, w, scale, shift, relu=True, row_budget=CONV_ROW_TARGET):
    """x: (N, H, W, Cin) bf16.  w: (9, Cin, Cout) (dh-major tap order).
    Returns (N, H, W, Cout) bf16."""
    N, H, W, Cin = x.shape
    Cout = w.shape[-1]
    Wp = W + 2

    tile_h = _pick_tile(H, max(1, row_budget // Wp))
    n_t = H // tile_h
    mo = tile_h * Wp                       # flattened output rows per tile
    mp = (tile_h + 2) * Wp + 8             # flattened padded input rows (+ tap slack)

    # Tile Cout so the resident weight block stays small for the big encoder layers.
    if 9 * Cin * Cout * 2 <= CONV_W_BYTES_BUDGET:
        tile_co = Cout
    else:
        co_limit = max(1, CONV_W_BYTES_BUDGET // (9 * Cin * 2))
        tile_co = _pick_tile(Cout, co_limit, multiple_of=128)
    n_co = Cout // tile_co

    # Zero-pad ('same'), then build per-tile row windows with a 1-row halo on
    # each side (~(tile_h+2)/tile_h duplication instead of the old 9x tap stack).
    xp = jnp.pad(x.astype(_BF16), ((0, 0), (1, 1), (1, 1), (0, 0)))   # (N, H+2, Wp, Cin)
    tiles = jnp.stack(
        [xp[:, i * tile_h: i * tile_h + tile_h + 2] for i in range(n_t)], axis=1)
    tiles = tiles.reshape(N * n_t, (tile_h + 2) * Wp, Cin)
    tiles = jnp.pad(tiles, ((0, 0), (0, mp - (tile_h + 2) * Wp), (0, 0)))

    out = pl.pallas_call(
        functools.partial(_conv3x3_kernel, wp=Wp, mo=mo, relu=relu),
        out_shape=jax.ShapeDtypeStruct((N * n_t, mo, Cout), _BF16),
        grid=(N * n_t, n_co),
        in_specs=[
            pl.BlockSpec((1, mp, Cin), lambda i, j: (i, 0, 0)),        # activations
            pl.BlockSpec((9, Cin, tile_co), lambda i, j: (0, 0, j)),   # weights (resident)
            pl.BlockSpec((1, tile_co), lambda i, j: (0, j)),           # BN scale
            pl.BlockSpec((1, tile_co), lambda i, j: (0, j)),           # BN shift
        ],
        out_specs=pl.BlockSpec((1, mo, tile_co), lambda i, j: (i, 0, j)),
        scratch_shapes=[pltpu.VMEM((mo, tile_co), jnp.float32)],
        compiler_params=pltpu.CompilerParams(
            dimension_semantics=("parallel", "parallel")),
    )(tiles, w.astype(_BF16),
      scale.reshape(1, Cout).astype(jnp.float32),
      shift.reshape(1, Cout).astype(jnp.float32))

    # Drop the 2 junk columns produced by the flattened-row formulation.
    out = out.reshape(N, n_t, tile_h, Wp, Cout)[:, :, :, :W, :]
    return out.reshape(N, H, W, Cout)


def maxpool(x, k):
    """Non-overlapping max pool, kernel=stride=k.  x: (N, H, W, C)."""
    N, H, W, C = x.shape
    assert H % k == 0 and W % k == 0, (H, W, k)
    Ho, Wo = H // k, W // k
    xr = x.reshape(N, Ho, k, Wo, k * C)     # pure metadata reshape, no HBM copies
    tile_ho = _pick_tile(Ho, max(1, POOL_ELEMS_BUDGET // (k * W * C)))
    out = pl.pallas_call(
        functools.partial(_maxpool_kernel, k=k, c=C),
        out_shape=jax.ShapeDtypeStruct((N, Ho, Wo, C), x.dtype),
        grid=(N, Ho // tile_ho),
        in_specs=[pl.BlockSpec((1, tile_ho, k, Wo, k * C),
                               lambda n, t: (n, t, 0, 0, 0))],
        out_specs=pl.BlockSpec((1, tile_ho, Wo, C), lambda n, t: (n, t, 0, 0)),
        compiler_params=pltpu.CompilerParams(
            dimension_semantics=("parallel", "parallel")),
    )(xr)
    return out


def _interp_mat(n_in, n_out):
    """1D bilinear interpolation matrix, PyTorch align_corners=True semantics."""
    A = np.zeros((n_out, n_in), np.float32)
    if n_in == 1:
        A[:, 0] = 1.0
        return A
    for o in range(n_out):
        src = o * (n_in - 1) / (n_out - 1)
        i0 = min(int(np.floor(src)), n_in - 2)
        f = src - i0
        A[o, i0] = 1.0 - f
        A[o, i0 + 1] = f
    return A


def bilinear_upsample(x, scale):
    """F.interpolate(scale_factor=scale, mode='bilinear', align_corners=True),
    implemented as two separable interpolation matmuls."""
    N, Hi, Wi, C = x.shape
    Ho, Wo = Hi * scale, Wi * scale
    rmat = jnp.asarray(_interp_mat(Hi, Ho), _BF16)   # (Ho, Hi)
    cmat = jnp.asarray(_interp_mat(Wi, Wo), _BF16)   # (Wo, Wi)

    # pass 1: interpolate along H on (N, Hi, Wi*C), tiled over the lane axis
    wc = Wi * C
    tile_wc = _pick_tile(wc, UPS_LANE_TARGET, multiple_of=128)
    y1 = pl.pallas_call(
        _upsample_rows_kernel,
        out_shape=jax.ShapeDtypeStruct((N, Ho, wc), _BF16),
        grid=(N, wc // tile_wc),
        in_specs=[pl.BlockSpec((Ho, Hi), lambda n, t: (0, 0)),
                  pl.BlockSpec((1, Hi, tile_wc), lambda n, t: (n, 0, t))],
        out_specs=pl.BlockSpec((1, Ho, tile_wc), lambda n, t: (n, 0, t)),
        compiler_params=pltpu.CompilerParams(
            dimension_semantics=("parallel", "parallel")),
    )(rmat, x.reshape(N, Hi, wc)).reshape(N, Ho, Wi, C)

    # pass 2: interpolate along W, tiled over output rows
    tile_ho = _pick_tile(Ho, 8)
    out = pl.pallas_call(
        functools.partial(_upsample_cols_kernel, tile_h=tile_ho),
        out_shape=jax.ShapeDtypeStruct((N, Ho, Wo, C), _BF16),
        grid=(N, Ho // tile_ho),
        in_specs=[pl.BlockSpec((Wo, Wi), lambda n, t: (0, 0)),
                  pl.BlockSpec((1, tile_ho, Wi, C), lambda n, t: (n, t, 0, 0))],
        out_specs=pl.BlockSpec((1, tile_ho, Wo, C), lambda n, t: (n, t, 0, 0)),
        compiler_params=pltpu.CompilerParams(
            dimension_semantics=("parallel", "parallel")),
    )(cmat, y1)
    return out


def conv1x1_sigmoid(x, w, b):
    """Final 1x1 conv + bias + sigmoid.  x: (N, H, W, Cin) bf16 -> f32 output."""
    N, H, W, Cin = x.shape
    Cout = w.shape[-1]
    M = N * H * W
    tile_m = _pick_tile(M, CONV1X1_ROW_TARGET, multiple_of=8)
    out = pl.pallas_call(
        _conv1x1_sig_kernel,
        out_shape=jax.ShapeDtypeStruct((M, Cout), jnp.float32),
        grid=(M // tile_m,),
        in_specs=[pl.BlockSpec((tile_m, Cin), lambda i: (i, 0)),
                  pl.BlockSpec((Cin, Cout), lambda i: (0, 0)),
                  pl.BlockSpec((1, Cout), lambda i: (0, 0))],
        out_specs=pl.BlockSpec((tile_m, Cout), lambda i: (i, 0)),
        compiler_params=pltpu.CompilerParams(dimension_semantics=("parallel",)),
    )(x.reshape(M, Cin).astype(_BF16), w.astype(_BF16),
      b.reshape(1, Cout).astype(jnp.float32))
    return out.reshape(N, H, W, Cout)


# ----------------------------------------------------------------------------
# Parameter initialization (deterministic, synthetic; eval-mode BN folded)
# ----------------------------------------------------------------------------
def _init_conv(key, cin, cout):
    kw, kg, kb = jax.random.split(key, 3)
    std = (2.0 / (cin * 9)) ** 0.5
    w = jax.random.normal(kw, (9, cin, cout), jnp.float32) * std
    gamma = 1.0 + 0.1 * jax.random.normal(kg, (cout,), jnp.float32)
    beta = 0.05 * jax.random.normal(kb, (cout,), jnp.float32)
    run_mean = jnp.zeros((cout,), jnp.float32)
    run_var = jnp.ones((cout,), jnp.float32)
    eps = 1e-5
    scale = gamma / jnp.sqrt(run_var + eps)
    shift = beta - run_mean * scale
    return {"w": w, "scale": scale, "shift": shift}


def _init_block(key, cin, cout, n=2):
    keys = jax.random.split(key, n)
    return [_init_conv(keys[i], cin if i == 0 else cout, cout) for i in range(n)]


def init_params(key, in_ch, out_ch):
    ks = iter(jax.random.split(key, 64))
    P = {}
    P["e1"] = _init_block(next(ks), in_ch, FILTERS[0])
    P["e2"] = _init_block(next(ks), FILTERS[0], FILTERS[1])
    P["e3"] = _init_block(next(ks), FILTERS[1], FILTERS[2])
    P["e4"] = _init_block(next(ks), FILTERS[2], FILTERS[3])
    P["e5"] = _init_block(next(ks), FILTERS[3], FILTERS[4])

    d4_cins = [64, 128, 256, 512, 1024]
    d3_cins = [64, 128, 256, UP_CH, 1024]
    d2_cins = [64, 128, UP_CH, UP_CH, 1024]
    d1_cins = [64, UP_CH, UP_CH, UP_CH, 1024]
    P["d4"] = [_init_block(next(ks), c, CAT_CH, n=1) for c in d4_cins]
    P["d4_conv"] = _init_block(next(ks), UP_CH, UP_CH, n=1)
    P["d3"] = [_init_block(next(ks), c, CAT_CH, n=1) for c in d3_cins]
    P["d3_conv"] = _init_block(next(ks), UP_CH, UP_CH, n=1)
    P["d2"] = [_init_block(next(ks), c, CAT_CH, n=1) for c in d2_cins]
    P["d2_conv"] = _init_block(next(ks), UP_CH, UP_CH, n=1)
    P["d1"] = [_init_block(next(ks), c, CAT_CH, n=1) for c in d1_cins]
    P["d1_conv"] = _init_block(next(ks), UP_CH, UP_CH, n=1)

    kfw, kfb = jax.random.split(next(ks))
    P["final_w"] = jax.random.normal(kfw, (UP_CH, out_ch), jnp.float32) * (1.0 / UP_CH) ** 0.5
    P["final_b"] = 0.01 * jax.random.normal(kfb, (out_ch,), jnp.float32)
    return P


# ----------------------------------------------------------------------------
# UNet3Plus forward (deep_supervision=False, CGM=False, training=False)
# ----------------------------------------------------------------------------
def unet3plus_forward(x_nchw, P):
    # wrapper boundary is NCHW (PyTorch convention); internals are NHWC bf16
    x = jnp.transpose(x_nchw, (0, 2, 3, 1)).astype(_BF16)

    def block(h, convs):
        for p in convs:
            h = conv3x3_bn_relu(h, p["w"], p["scale"], p["shift"], relu=True)
        return h

    e1 = block(x, P["e1"])
    e2 = block(maxpool(e1, 2), P["e2"])
    e3 = block(maxpool(e2, 2), P["e3"])
    e4 = block(maxpool(e3, 2), P["e4"])
    e5 = block(maxpool(e4, 2), P["e5"])

    # TODO(synk): the five decoder-branch convs could be fused into a single
    # kernel writing the concatenated 320-channel slab directly (lane-dense
    # stores, no XLA concat); kept as separate calls + jnp.concatenate here.
    d4_in = [maxpool(e1, 8), maxpool(e2, 4), maxpool(e3, 2), e4,
             bilinear_upsample(e5, 2)]
    d4 = jnp.concatenate([block(s, p) for s, p in zip(d4_in, P["d4"])], axis=-1)
    d4 = block(d4, P["d4_conv"])

    d3_in = [maxpool(e1, 4), maxpool(e2, 2), e3,
             bilinear_upsample(d4, 2), bilinear_upsample(e5, 4)]
    d3 = jnp.concatenate([block(s, p) for s, p in zip(d3_in, P["d3"])], axis=-1)
    d3 = block(d3, P["d3_conv"])

    d2_in = [maxpool(e1, 2), e2, bilinear_upsample(d3, 2),
             bilinear_upsample(d4, 4), bilinear_upsample(e5, 8)]
    d2 = jnp.concatenate([block(s, p) for s, p in zip(d2_in, P["d2"])], axis=-1)
    d2 = block(d2, P["d2_conv"])

    d1_in = [e1, bilinear_upsample(d2, 2), bilinear_upsample(d3, 4),
             bilinear_upsample(d4, 8), bilinear_upsample(e5, 16)]
    d1 = jnp.concatenate([block(s, p) for s, p in zip(d1_in, P["d1"])], axis=-1)
    d1 = block(d1, P["d1_conv"])

    out = conv1x1_sigmoid(d1, P["final_w"], P["final_b"])
    return jnp.transpose(out, (0, 3, 1, 2))   # back to NCHW


if __name__ == "__main__":
    key = jax.random.PRNGKey(0)
    kx, kp, ks = jax.random.split(key, 3)

    N, C_IN, C_OUT, S = 2, 3, 3, 16
    x = jax.random.normal(kx, (N, C_IN, S, S), jnp.float32)
    params = init_params(kp, C_IN, C_OUT)

    # Sanity: force the multi-row-tile conv path (as used at real resolutions)
    # and check it matches the single-tile path.
    xs = jax.random.normal(ks, (1, 16, 16, FILTERS[0]), jnp.float32).astype(_BF16)
    pc = params["e2"][0]
    y_tiled = conv3x3_bn_relu(xs, pc["w"], pc["scale"], pc["shift"], row_budget=64)
    y_full = conv3x3_bn_relu(xs, pc["w"], pc["scale"], pc["shift"])
    assert y_tiled.shape == y_full.shape
    assert bool(jnp.allclose(y_tiled.astype(jnp.float32),
                             y_full.astype(jnp.float32), atol=5e-2, rtol=5e-2))

    y = unet3plus_forward(x, params)
    y = jax.block_until_ready(y)

    assert y.shape == (N, C_OUT, S, S), y.shape
    assert bool(jnp.all(jnp.isfinite(y)))
    assert bool(jnp.all((y >= 0.0) & (y <= 1.0)))  # sigmoid output range
    print("KERNEL_OK")
</pallas_src>

<mosaic_0001>
module attributes {stable_mosaic.version = 11 : i64} {
  func.func @_conv3x3_kernel(%arg0: i32, %arg1: i32, %arg2: memref<1x80x64xbf16, #tpu.memory_space<vmem>>, %arg3: memref<9x64x128xbf16, #tpu.memory_space<vmem>>, %arg4: memref<1x128xf32, #tpu.memory_space<vmem>>, %arg5: memref<1x128xf32, #tpu.memory_space<vmem>>, %arg6: memref<1x36x128xbf16, #tpu.memory_space<vmem>>, %arg7: memref<36x128xf32, #tpu.memory_space<vmem>>) attributes {dimension_semantics = [#tpu.dimension_semantics<parallel>, #tpu.dimension_semantics<parallel>], iteration_bounds = array<i64: 8, 1>, scalar_prefetch = 0 : i64, scratch_operands = 1 : i64, tpu.core_type = #tpu.core_type<tc>, window_params = [{transform_indices = @transform_0, window_bounds = array<i64: 1, 80, 64>}, {transform_indices = @transform_1, window_bounds = array<i64: 9, 64, 128>}, {transform_indices = @transform_2, window_bounds = array<i64: 1, 128>}, {transform_indices = @transform_3, window_bounds = array<i64: 1, 128>}, {transform_indices = @transform_4, window_bounds = array<i64: 1, 36, 128>}]} {
    %c0 = arith.constant 0 : index
    %c0_0 = arith.constant 0 : index
    %c0_1 = arith.constant 0 : index
    %0 = vector.load %arg2[%c0, %c0_0, %c0_1] : memref<1x80x64xbf16, #tpu.memory_space<vmem>>, vector<1x36x64xbf16>
    %1 = vector.shape_cast %0 : vector<1x36x64xbf16> to vector<36x64xbf16>
    %c0_2 = arith.constant 0 : index
    %c0_3 = arith.constant 0 : index
    %c0_4 = arith.constant 0 : index
    %2 = vector.load %arg3[%c0_2, %c0_3, %c0_4] : memref<9x64x128xbf16, #tpu.memory_space<vmem>>, vector<1x64x128xbf16>
    %3 = vector.shape_cast %2 : vector<1x64x128xbf16> to vector<64x128xbf16>
    %cst = arith.constant dense<0.000000e+00> : vector<36x128xf32>
    %4 = tpu.matmul %1, %3, %cst {dimension_numbers = #tpu.dot_dimension_numbers<[1], [0], [0], [1], [0, 0, 1, 1], [], []>} : vector<36x64xbf16>, vector<64x128xbf16>, vector<36x128xf32> -> vector<36x128xf32>
    %c0_5 = arith.constant 0 : index
    %c0_6 = arith.constant 0 : index
    %5 = vector.load %arg7[%c0_5, %c0_6] : memref<36x128xf32, #tpu.memory_space<vmem>>, vector<36x128xf32>
    tpu.vector_store %arg7[%c0_5, %c0_6], %4 {strides = array<i32>} : memref<36x128xf32, #tpu.memory_space<vmem>>, vector<36x128xf32>,
    %c0_7 = arith.constant 0 : index
    %c1 = arith.constant 1 : index
    %c0_8 = arith.constant 0 : index
    %6 = vector.load %arg2[%c0_7, %c1, %c0_8] : memref<1x80x64xbf16, #tpu.memory_space<vmem>>, vector<1x36x64xbf16>
    %7 = vector.shape_cast %6 : vector<1x36x64xbf16> to vector<36x64xbf16>
    %c1_9 = arith.constant 1 : index
    %c0_10 = arith.constant 0 : index
    %c0_11 = arith.constant 0 : index
    %8 = vector.load %arg3[%c1_9, %c0_10, %c0_11] : memref<9x64x128xbf16, #tpu.memory_space<vmem>>, vector<1x64x128xbf16>
    %9 = vector.shape_cast %8 : vector<1x64x128xbf16> to vector<64x128xbf16>
    %cst_12 = arith.constant dense<0.000000e+00> : vector<36x128xf32>
    %10 = tpu.matmul %7, %9, %cst_12 {dimension_numbers = #tpu.dot_dimension_numbers<[1], [0], [0], [1], [0, 0, 1, 1], [], []>} : vector<36x64xbf16>, vector<64x128xbf16>, vector<36x128xf32> -> vector<36x128xf32>
    %c0_13 = arith.constant 0 : index
    %c0_14 = arith.constant 0 : index
    %11 = vector.load %arg7[%c0_13, %c0_14] : memref<36x128xf32, #tpu.memory_space<vmem>>, vector<36x128xf32>
    %12 = arith.addf %11, %10 : vector<36x128xf32>
    %c0_15 = arith.constant 0 : index
    %c0_16 = arith.constant 0 : index
    %13 = vector.load %arg7[%c0_15, %c0_16] : memref<36x128xf32, #tpu.memory_space<vmem>>, vector<36x128xf32>
    tpu.vector_store %arg7[%c0_15, %c0_16], %12 {strides = array<i32>} : memref<36x128xf32, #tpu.memory_space<vmem>>, vector<36x128xf32>,
    %c0_17 = arith.constant 0 : index
    %c2 = arith.constant 2 : index
    %c0_18 = arith.constant 0 : index
    %14 = vector.load %arg2[%c0_17, %c2, %c0_18] : memref<1x80x64xbf16, #tpu.memory_space<vmem>>, vector<1x36x64xbf16>
    %15 = vector.shape_cast %14 : vector<1x36x64xbf16> to vector<36x64xbf16>
    %c2_19 = arith.constant 2 : index
    %c0_20 = arith.constant 0 : index
    %c0_21 = arith.constant 0 : index
    %16 = vector.load %arg3[%c2_19, %c0_20, %c0_21] : memref<9x64x128xbf16, #tpu.memory_space<vmem>>, vector<1x64x128xbf16>
    %17 = vector.shape_cast %16 : vector<1x64x128xbf16> to vector<64x128xbf16>
    %cst_22 = arith.constant dense<0.000000e+00> : vector<36x128xf32>
    %18 = tpu.matmul %15, %17, %cst_22 {dimension_numbers = #tpu.dot_dimension_numbers<[1], [0], [0], [1], [0, 0, 1, 1], [], []>} : vector<36x64xbf16>, vector<64x128xbf16>, vector<36x128xf32> -> vector<36x128xf32>
    %c0_23 = arith.constant 0 : index
    %c0_24 = arith.constant 0 : index
    %19 = vector.load %arg7[%c0_23, %c0_24] : memref<36x128xf32, #tpu.memory_space<vmem>>, vector<36x128xf32>
    %20 = arith.addf %19, %18 : vector<36x128xf32>
    %c0_25 = arith.constant 0 : index
    %c0_26 = arith.constant 0 : index
    %21 = vector.load %arg7[%c0_25, %c0_26] : memref<36x128xf32, #tpu.memory_space<vmem>>, vector<36x128xf32>
    tpu.vector_store %arg7[%c0_25, %c0_26], %20 {strides = array<i32>} : memref<36x128xf32, #tpu.memory_space<vmem>>, vector<36x128xf32>,
    %c0_27 = arith.constant 0 : index
    %c18 = arith.constant 18 : index
    %c0_28 = arith.constant 0 : index
    %22 = vector.load %arg2[%c0_27, %c18, %c0_28] : memref<1x80x64xbf16, #tpu.memory_space<vmem>>, vector<1x36x64xbf16>
    %23 = vector.shape_cast %22 : vector<1x36x64xbf16> to vector<36x64xbf16>
    %c3 = arith.constant 3 : index
    %c0_29 = arith.constant 0 : index
    %c0_30 = arith.constant 0 : index
    %24 = vector.load %arg3[%c3, %c0_29, %c0_30] : memref<9x64x128xbf16, #tpu.memory_space<vmem>>, vector<1x64x128xbf16>
    %25 = vector.shape_cast %24 : vector<1x64x128xbf16> to vector<64x128xbf16>
    %cst_31 = arith.constant dense<0.000000e+00> : vector<36x128xf32>
    %26 = tpu.matmul %23, %25, %cst_31 {dimension_numbers = #tpu.dot_dimension_numbers<[1], [0], [0], [1], [0, 0, 1, 1], [], []>} : vector<36x64xbf16>, vector<64x128xbf16>, vector<36x128xf32> -> vector<36x128xf32>
    %c0_32 = arith.constant 0 : index
    %c0_33 = arith.constant 0 : index
    %27 = vector.load %arg7[%c0_32, %c0_33] : memref<36x128xf32, #tpu.memory_space<vmem>>, vector<36x128xf32>
    %28 = arith.addf %27, %26 : vector<36x128xf32>
    %c0_34 = arith.constant 0 : index
    %c0_35 = arith.constant 0 : index
    %29 = vector.load %arg7[%c0_34, %c0_35] : memref<36x128xf32, #tpu.memory_space<vmem>>, vector<36x128xf32>
    tpu.vector_store %arg7[%c0_34, %c0_35], %28 {strides = array<i32>} : memref<36x128xf32, #tpu.memory_space<vmem>>, vector<36x128xf32>,
    %c0_36 = arith.constant 0 : index
    %c19 = arith.constant 19 : index
    %c0_37 = arith.constant 0 : index
    %30 = vector.load %arg2[%c0_36, %c19, %c0_37] : memref<1x80x64xbf16, #tpu.memory_space<vmem>>, vector<1x36x64xbf16>
    %31 = vector.shape_cast %30 : vector<1x36x64xbf16> to vector<36x64xbf16>
    %c4 = arith.constant 4 : index
    %c0_38 = arith.constant 0 : index
    %c0_39 = arith.constant 0 : index
    %32 = vector.load %arg3[%c4, %c0_38, %c0_39] : memref<9x64x128xbf16, #tpu.memory_space<vmem>>, vector<1x64x128xbf16>
    %33 = vector.shape_cast %32 : vector<1x64x128xbf16> to vector<64x128xbf16>
    %cst_40 = arith.constant dense<0.000000e+00> : vector<36x128xf32>
    %34 = tpu.matmul %31, %33, %cst_40 {dimension_numbers = #tpu.dot_dimension_numbers<[1], [0], [0], [1], [0, 0, 1, 1], [], []>} : vector<36x64xbf16>, vector<64x128xbf16>, vector<36x128xf32> -> vector<36x128xf32>
    %c0_41 = arith.constant 0 : index
    %c0_42 = arith.constant 0 : index
    %35 = vector.load %arg7[%c0_41, %c0_42] : memref<36x128xf32, #tpu.memory_space<vmem>>, vector<36x128xf32>
    %36 = arith.addf %35, %34 : vector<36x128xf32>
    %c0_43 = arith.constant 0 : index
    %c0_44 = arith.constant 0 : index
    %37 = vector.load %arg7[%c0_43, %c0_44] : memref<36x128xf32, #tpu.memory_space<vmem>>, vector<36x128xf32>
    tpu.vector_store %arg7[%c0_43, %c0_44], %36 {strides = array<i32>} : memref<36x128xf32, #tpu.memory_space<vmem>>, vector<36x128xf32>,
    %c0_45 = arith.constant 0 : index
    %c20 = arith.constant 20 : index
    %c0_46 = arith.constant 0 : index
    %38 = vector.load %arg2[%c0_45, %c20, %c0_46] : memref<1x80x64xbf16, #tpu.memory_space<vmem>>, vector<1x36x64xbf16>
    %39 = vector.shape_cast %38 : vector<1x36x64xbf16> to vector<36x64xbf16>
    %c5 = arith.constant 5 : index
    %c0_47 = arith.constant 0 : index
    %c0_48 = arith.constant 0 : index
    %40 = vector.load %arg3[%c5, %c0_47, %c0_48] : memref<9x64x128xbf16, #tpu.memory_space<vmem>>, vector<1x64x128xbf16>
    %41 = vector.shape_cast %40 : vector<1x64x128xbf16> to vector<64x128xbf16>
    %cst_49 = arith.constant dense<0.000000e+00> : vector<36x128xf32>
    %42 = tpu.matmul %39, %41, %cst_49 {dimension_numbers = #tpu.dot_dimension_numbers<[1], [0], [0], [1], [0, 0, 1, 1], [], []>} : vector<36x64xbf16>, vector<64x128xbf16>, vector<36x128xf32> -> vector<36x128xf32>
    %c0_50 = arith.constant 0 : index
    %c0_51 = arith.constant 0 : index
    %43 = vector.load %arg7[%c0_50, %c0_51] : memref<36x128xf32, #tpu.memory_space<vmem>>, vector<36x128xf32>
    %44 = arith.addf %43, %42 : vector<36x128xf32>
    %c0_52 = arith.constant 0 : index
    %c0_53 = arith.constant 0 : index
    %45 = vector.load %arg7[%c0_52, %c0_53] : memref<36x128xf32, #tpu.memory_space<vmem>>, vector<36x128xf32>
    tpu.vector_store %arg7[%c0_52, %c0_53], %44 {strides = array<i32>} : memref<36x128xf32, #tpu.memory_space<vmem>>, vector<36x128xf32>,
    %c0_54 = arith.constant 0 : index
    %c36 = arith.constant 36 : index
    %c0_55 = arith.constant 0 : index
    %46 = vector.load %arg2[%c0_54, %c36, %c0_55] : memref<1x80x64xbf16, #tpu.memory_space<vmem>>, vector<1x36x64xbf16>
    %47 = vector.shape_cast %46 : vector<1x36x64xbf16> to vector<36x64xbf16>
    %c6 = arith.constant 6 : index
    %c0_56 = arith.constant 0 : index
    %c0_57 = arith.constant 0 : index
    %48 = vector.load %arg3[%c6, %c0_56, %c0_57] : memref<9x64x128xbf16, #tpu.memory_space<vmem>>, vector<1x64x128xbf16>
    %49 = vector.shape_cast %48 : vector<1x64x128xbf16> to vector<64x128xbf16>
    %cst_58 = arith.constant dense<0.000000e+00> : vector<36x128xf32>
    %50 = tpu.matmul %47, %49, %cst_58 {dimension_numbers = #tpu.dot_dimension_numbers<[1], [0], [0], [1], [0, 0, 1, 1], [], []>} : vector<36x64xbf16>, vector<64x128xbf16>, vector<36x128xf32> -> vector<36x128xf32>
    %c0_59 = arith.constant 0 : index
    %c0_60 = arith.constant 0 : index
    %51 = vector.load %arg7[%c0_59, %c0_60] : memref<36x128xf32, #tpu.memory_space<vmem>>, vector<36x128xf32>
    %52 = arith.addf %51, %50 : vector<36x128xf32>
    %c0_61 = arith.constant 0 : index
    %c0_62 = arith.constant 0 : index
    %53 = vector.load %arg7[%c0_61, %c0_62] : memref<36x128xf32, #tpu.memory_space<vmem>>, vector<36x128xf32>
    tpu.vector_store %arg7[%c0_61, %c0_62], %52 {strides = array<i32>} : memref<36x128xf32, #tpu.memory_space<vmem>>, vector<36x128xf32>,
    %c0_63 = arith.constant 0 : index
    %c37 = arith.constant 37 : index
    %c0_64 = arith.constant 0 : index
    %54 = vector.load %arg2[%c0_63, %c37, %c0_64] : memref<1x80x64xbf16, #tpu.memory_space<vmem>>, vector<1x36x64xbf16>
    %55 = vector.shape_cast %54 : vector<1x36x64xbf16> to vector<36x64xbf16>
    %c7 = arith.constant 7 : index
    %c0_65 = arith.constant 0 : index
    %c0_66 = arith.constant 0 : index
    %56 = vector.load %arg3[%c7, %c0_65, %c0_66] : memref<9x64x128xbf16, #tpu.memory_space<vmem>>, vector<1x64x128xbf16>
    %57 = vector.shape_cast %56 : vector<1x64x128xbf16> to vector<64x128xbf16>
    %cst_67 = arith.constant dense<0.000000e+00> : vector<36x128xf32>
    %58 = tpu.matmul %55, %57, %cst_67 {dimension_numbers = #tpu.dot_dimension_numbers<[1], [0], [0], [1], [0, 0, 1, 1], [], []>} : vector<36x64xbf16>, vector<64x128xbf16>, vector<36x128xf32> -> vector<36x128xf32>
    %c0_68 = arith.constant 0 : index
    %c0_69 = arith.constant 0 : index
    %59 = vector.load %arg7[%c0_68, %c0_69] : memref<36x128xf32, #tpu.memory_space<vmem>>, vector<36x128xf32>
    %60 = arith.addf %59, %58 : vector<36x128xf32>
    %c0_70 = arith.constant 0 : index
    %c0_71 = arith.constant 0 : index
    %61 = vector.load %arg7[%c0_70, %c0_71] : memref<36x128xf32, #tpu.memory_space<vmem>>, vector<36x128xf32>
    tpu.vector_store %arg7[%c0_70, %c0_71], %60 {strides = array<i32>} : memref<36x128xf32, #tpu.memory_space<vmem>>, vector<36x128xf32>,
    %c0_72 = arith.constant 0 : index
    %c38 = arith.constant 38 : index
    %c0_73 = arith.constant 0 : index
    %62 = vector.load %arg2[%c0_72, %c38, %c0_73] : memref<1x80x64xbf16, #tpu.memory_space<vmem>>, vector<1x36x64xbf16>
    %63 = vector.shape_cast %62 : vector<1x36x64xbf16> to vector<36x64xbf16>
    %c8 = arith.constant 8 : index
    %c0_74 = arith.constant 0 : index
    %c0_75 = arith.constant 0 : index
    %64 = vector.load %arg3[%c8, %c0_74, %c0_75] : memref<9x64x128xbf16, #tpu.memory_space<vmem>>, vector<1x64x128xbf16>
    %65 = vector.shape_cast %64 : vector<1x64x128xbf16> to vector<64x128xbf16>
    %cst_76 = arith.constant dense<0.000000e+00> : vector<36x128xf32>
    %66 = tpu.matmul %63, %65, %cst_76 {dimension_numbers = #tpu.dot_dimension_numbers<[1], [0], [0], [1], [0, 0, 1, 1], [], []>} : vector<36x64xbf16>, vector<64x128xbf16>, vector<36x128xf32> -> vector<36x128xf32>
    %c0_77 = arith.constant 0 : index
    %c0_78 = arith.constant 0 : index
    %67 = vector.load %arg7[%c0_77, %c0_78] : memref<36x128xf32, #tpu.memory_space<vmem>>, vector<36x128xf32>
    %68 = arith.addf %67, %66 : vector<36x128xf32>
    %c0_79 = arith.constant 0 : index
    %c0_80 = arith.constant 0 : index
    %69 = vector.load %arg7[%c0_79, %c0_80] : memref<36x128xf32, #tpu.memory_space<vmem>>, vector<36x128xf32>
    tpu.vector_store %arg7[%c0_79, %c0_80], %68 {strides = array<i32>} : memref<36x128xf32, #tpu.memory_space<vmem>>, vector<36x128xf32>,
    %c0_81 = arith.constant 0 : index
    %c0_82 = arith.constant 0 : index
    %70 = vector.load %arg7[%c0_81, %c0_82] : memref<36x128xf32, #tpu.memory_space<vmem>>, vector<36x128xf32>
    %c0_83 = arith.constant 0 : index
    %c0_84 = arith.constant 0 : index
    %71 = vector.load %arg4[%c0_83, %c0_84] : memref<1x128xf32, #tpu.memory_space<vmem>>, vector<1x128xf32>
    %72 = vector.broadcast %71 : vector<1x128xf32> to vector<36x128xf32>
    %73 = arith.mulf %70, %72 : vector<36x128xf32>
    %c0_85 = arith.constant 0 : index
    %c0_86 = arith.constant 0 : index
    %74 = vector.load %arg5[%c0_85, %c0_86] : memref<1x128xf32, #tpu.memory_space<vmem>>, vector<1x128xf32>
    %75 = vector.broadcast %74 : vector<1x128xf32> to vector<36x128xf32>
    %76 = arith.addf %73, %75 : vector<36x128xf32>
    %cst_87 = arith.constant 0.000000e+00 : f32
    %77 = vector.broadcast %cst_87 : f32 to vector<36x128xf32>
    %78 = arith.maximumf %76, %77 : vector<36x128xf32>
    %79 = arith.truncf %78 : vector<36x128xf32> to vector<36x128xbf16>
    %c0_88 = arith.constant 0 : index
    %c0_89 = arith.constant 0 : index
    %c0_90 = arith.constant 0 : index
    %80 = vector.load %arg6[%c0_88, %c0_89, %c0_90] : memref<1x36x128xbf16, #tpu.memory_space<vmem>>, vector<1x36x128xbf16>
    %81 = vector.shape_cast %80 : vector<1x36x128xbf16> to vector<36x128xbf16>
    %82 = vector.shape_cast %79 : vector<36x128xbf16> to vector<1x36x128xbf16>
    tpu.vector_store %arg6[%c0_88, %c0_89, %c0_90], %82 {strides = array<i32>} : memref<1x36x128xbf16, #tpu.memory_space<vmem>>, vector<1x36x128xbf16>,
    return
  }
  func.func @transform_0(%arg0: i32, %arg1: i32) -> (i32, i32, i32) {
    %c0_i32 = arith.constant 0 : i32
    %c0_i32_0 = arith.constant 0 : i32
    %c0_i32_1 = arith.constant 0 : i32
    return %arg0, %c0_i32, %c0_i32_0 : i32, i32, i32
  }
  func.func @transform_1(%arg0: i32, %arg1: i32) -> (i32, i32, i32) {
    %c0_i32 = arith.constant 0 : i32
    %c0_i32_0 = arith.constant 0 : i32
    %c0_i32_1 = arith.constant 0 : i32
    return %c0_i32, %c0_i32_0, %arg1 : i32, i32, i32
  }
  func.func @transform_2(%arg0: i32, %arg1: i32) -> (i32, i32) {
    %c0_i32 = arith.constant 0 : i32
    %c0_i32_0 = arith.constant 0 : i32
    return %c0_i32, %arg1 : i32, i32
  }
  func.func @transform_3(%arg0: i32, %arg1: i32) -> (i32, i32) {
    %c0_i32 = arith.constant 0 : i32
    %c0_i32_0 = arith.constant 0 : i32
    return %c0_i32, %arg1 : i32, i32
  }
  func.func @transform_4(%arg0: i32, %arg1: i32) -> (i32, i32, i32) {
    %c0_i32 = arith.constant 0 : i32
    %c0_i32_0 = arith.constant 0 : i32
    return %arg0, %c0_i32, %arg1 : i32, i32, i32
  }
}

</mosaic_0001>

<llo_original>
// kernel: tpu_custom_call.1
$region0: #{tpu_custom_call.1}
  #allocation0 [shape = 'u32[]', space=smem, size = 0x4, offset = 0x4, fixed_abs, tag = 'smem constant byte address 0x4 - core index']
  #allocation1 [shape = 'u32[144,128]{1,0:T(1,128)}', space=vmem, size = 0x12000, scoped, tag = 'internal scratch']
  #allocation2 [shape = 'f32[36,128]{1,0:T(8,128)}', space=vmem, size = 0x5000, scoped, tag = 'scratch operand']
  %s0 = inlined_call_operand.vmem [shape: bf16[8,80,64], index: 0, kind: input, shape index: {}]
  %s1 = inlined_call_operand.vmem [shape: bf16[9,64,128], index: 1, kind: input, shape index: {}]
  %s2 = inlined_call_operand.vmem [shape: f32[1,128], index: 2, kind: input, shape index: {}]
  %s3 = inlined_call_operand.vmem [shape: f32[1,128], index: 3, kind: input, shape index: {}]
  %s4 = inlined_call_operand.vmem [shape: bf16[8,36,128], index: 4, kind: output, shape index: {}]
  %s5 = sld [smem:[#allocation0]]
  $region49: #{tpu_custom_call.1} parent=0
    _
  %s7 = ssub.s32 1, %s5
  %s8 = scalar_select 0, %s7, %s5
  loop: start=0, step=1, limit=10
  $region2: #{tpu_custom_call.1} parent=0 // loop_pre_header
    _
  $region3: #{tpu_custom_call.1} parent=0 // loop_header
    %s10 = sphi 0, %s14
    %p11 = scmp.ge.s32.totalorder %s10, 10
    %s17 = sphi 0, %s29
    %s18 = sphi 0, %s25
    %s19 = sphi 0, %s17
    %s20 = sphi 0, %s18
    %s21 = sphi 0, %s19
    %s22 = sphi 0, %s20
    %s32 = sphi 0, %s34
    %s35 = sphi 0, %s32
    %s36 = sphi 0, %s35
    %s52 = sphi 0, %s36
    %s58 = sphi 0, %s60
    %s61 = sphi 0, %s58
    %s62 = sphi 0, %s61
    %s78 = sphi 0, %s62
    %s84 = sphi 0, %s86
    %s87 = sphi 0, %s84
    %s88 = sphi 0, %s87
    %s104 = sphi 0, %s88
    %s110 = sphi 0, %s112
    %s113 = sphi 0, %s110
    %s114 = sphi 0, %s113
    %s130 = sphi 0, %s114
    %s138 = sphi 0, %s140
    %s141 = sphi 0, %s138
    %s142 = sphi 0, %s141
    %s158 = sphi 0, %s142
  $region4: #{tpu_custom_call.1} parent=0 // loop_header_branch
    %13 = sbr.rel (%p11) target = $region8
  $region5: #{tpu_custom_call.1} parent=0 // loop_body
    %s15 = ssub.s32 %s10, 1
    %s16 = ssub.s32 %s10, 2
    %s23 = sadd.s32 1, %s18
    %p24 = scmp.ge.s32.totalorder %s23, 1
    %s25 = scalar_select %p24, 0, %s23
    %s26 = sadd.s32 1, %s17
    %s27 = scalar_select %p24, %s26, %s17
    %p28 = scmp.ge.s32.totalorder %s27, 8
    %s29 = scalar_select %p28, 0, %s27
    %s30 = ssub.s32 %s17, %s29
    %p31 = scmp.eq.s32.totalorder %s30, 0
    %s33 = sadd.s32 %s32, 1
    %s34 = scalar_select %p31, %s32, %s33
    %p37 = pneg %p31
    %p38 = scmp.eq.s32.totalorder %s10, 7
    %p39 = por %p37, %p38
    %p40 = scmp.ne.s32.totalorder %s32, %s35
    %p41 = scmp.eq.s32.totalorder %s10, 0
    %p42 = por %p40, %p41
    %p43 = scmp.ne.s32.totalorder %s32, %s35
    %p44 = scmp.eq.s32.totalorder %s15, 7
    %p45 = por %p43, %p44
    %p46 = scmp.ne.s32.totalorder %s35, %s36
    %p47 = scmp.eq.s32.totalorder %s15, 0
    %p48 = por %p46, %p47
    %p49 = scmp.ne.s32.totalorder %s35, %s36
    %p50 = scmp.eq.s32.totalorder %s16, 7
    %p51 = por %p49, %p50
    %p53 = scmp.ne.s32.totalorder %s36, %s52
    %p54 = scmp.eq.s32.totalorder %s16, 0
    %p55 = por %p53, %p54
    %s56 = ssub.s32 %s18, %s25
    %p57 = scmp.eq.s32.totalorder %s56, 0
    %s59 = sadd.s32 %s58, 1
    %s60 = scalar_select %p57, %s58, %s59
    %p63 = pneg %p57
    %p64 = scmp.eq.s32.totalorder %s10, 7
    %p65 = por %p63, %p64
    %p66 = scmp.ne.s32.totalorder %s58, %s61
    %p67 = scmp.eq.s32.totalorder %s10, 0
    %p68 = por %p66, %p67
    %p69 = scmp.ne.s32.totalorder %s58, %s61
    %p70 = scmp.eq.s32.totalorder %s15, 7
    %p71 = por %p69, %p70
    %p72 = scmp.ne.s32.totalorder %s61, %s62
    %p73 = scmp.eq.s32.totalorder %s15, 0
    %p74 = por %p72, %p73
    %p75 = scmp.ne.s32.totalorder %s61, %s62
    %p76 = scmp.eq.s32.totalorder %s16, 7
    %p77 = por %p75, %p76
    %p79 = scmp.ne.s32.totalorder %s62, %s78
    %p80 = scmp.eq.s32.totalorder %s16, 0
    %p81 = por %p79, %p80
    %s82 = ssub.s32 %s18, %s25
    %p83 = scmp.eq.s32.totalorder %s82, 0
    %s85 = sadd.s32 %s84, 1
    %s86 = scalar_select %p83, %s84, %s85
    %p89 = pneg %p83
    %p90 = scmp.eq.s32.totalorder %s10, 7
    %p91 = por %p89, %p90
    %p92 = scmp.ne.s32.totalorder %s84, %s87
    %p93 = scmp.eq.s32.totalorder %s10, 0
    %p94 = por %p92, %p93
    %p95 = scmp.ne.s32.totalorder %s84, %s87
    %p96 = scmp.eq.s32.totalorder %s15, 7
    %p97 = por %p95, %p96
    %p98 = scmp.ne.s32.totalorder %s87, %s88
    %p99 = scmp.eq.s32.totalorder %s15, 0
    %p100 = por %p98, %p99
    %p101 = scmp.ne.s32.totalorder %s87, %s88
    %p102 = scmp.eq.s32.totalorder %s16, 7
    %p103 = por %p101, %p102
    %p105 = scmp.ne.s32.totalorder %s88, %s104
    %p106 = scmp.eq.s32.totalorder %s16, 0
    %p107 = por %p105, %p106
    %s108 = ssub.s32 %s18, %s25
    %p109 = scmp.eq.s32.totalorder %s108, 0
    %s111 = sadd.s32 %s110, 1
    %s112 = scalar_select %p109, %s110, %s111
    %p115 = pneg %p109
    %p116 = scmp.eq.s32.totalorder %s10, 7
    %p117 = por %p115, %p116
    %p118 = scmp.ne.s32.totalorder %s110, %s113
    %p119 = scmp.eq.s32.totalorder %s10, 0
    %p120 = por %p118, %p119
    %p121 = scmp.ne.s32.totalorder %s110, %s113
    %p122 = scmp.eq.s32.totalorder %s15, 7
    %p123 = por %p121, %p122
    %p124 = scmp.ne.s32.totalorder %s113, %s114
    %p125 = scmp.eq.s32.totalorder %s15, 0
    %p126 = por %p124, %p125
    %p127 = scmp.ne.s32.totalorder %s113, %s114
    %p128 = scmp.eq.s32.totalorder %s16, 7
    %p129 = por %p127, %p128
    %p131 = scmp.ne.s32.totalorder %s114, %s130
    %p132 = scmp.eq.s32.totalorder %s16, 0
    %p133 = por %p131, %p132
    %s134 = ssub.s32 %s17, %s29
    %s135 = ssub.s32 %s18, %s25
    %s136 = sor.u32 %s134, %s135
    %p137 = scmp.eq.s32.totalorder %s136, 0
    %s139 = sadd.s32 %s138, 1
    %s140 = scalar_select %p137, %s138, %s139
    %p143 = pneg %p137
    %p144 = scmp.eq.s32.totalorder %s10, 7
    %p145 = por %p143, %p144
    %p146 = scmp.ne.s32.totalorder %s138, %s141
    %p147 = scmp.eq.s32.totalorder %s10, 0
    %p148 = por %p146, %p147
    %p149 = scmp.ne.s32.totalorder %s138, %s141
    %p150 = scmp.eq.s32.totalorder %s15, 7
    %p151 = por %p149, %p150
    %p152 = scmp.ne.s32.totalorder %s141, %s142
    %p153 = scmp.eq.s32.totalorder %s15, 0
    %p154 = por %p152, %p153
    %p155 = scmp.ne.s32.totalorder %s141, %s142
    %p156 = scmp.eq.s32.totalorder %s16, 7
    %p157 = por %p155, %p156
    %p159 = scmp.ne.s32.totalorder %s142, %s158
    %p160 = scmp.eq.s32.totalorder %s16, 0
    %p161 = por %p159, %p160
    %p162 = scmp.le.s32.totalorder 1, %s10
    %p163 = scmp.lt.s32.totalorder %s10, 9
    %p164 = pnand %p162, %p163
    %p165 = pneg %p164
    // Predicated region
    $region9: #{tpu_custom_call.1} parent=5 // pred_check
      _
    $region10: #{tpu_custom_call.1} parent=5 // pred_check_branch
      %167 = sbr.rel (%p164) target = $region12
    $region11: #{tpu_custom_call.1} parent=5 // pred_region
      %s168 = ssub.s32 %s10, 1
      // Predicated region
      $region13: #{tpu_custom_call.1} parent=11 // pred_check
        %p169 = pneg %p74
      $region14: #{tpu_custom_call.1} parent=11 // pred_check_branch
        %171 = sbr.rel (%p169) target = $region16
      $region15: #{tpu_custom_call.1} parent=11 // pred_region
        %p172 = scmp.lt.s32.totalorder %s20, 0
        %s173 = scalar_select %p172, %s20, 0
        %s174 = smul.addr %s173, 4
        %s175 = scalar_lea.vmem %s1, %s174
      $region16: #{tpu_custom_call.1} parent=11 // pred_fallthru
        _
      // Predicated region
      $region17: #{tpu_custom_call.1} parent=11 // pred_check
        %p176 = pneg %p100
      $region18: #{tpu_custom_call.1} parent=11 // pred_check_branch
        %178 = sbr.rel (%p176) target = $region20
      $region19: #{tpu_custom_call.1} parent=11 // pred_region
        %p179 = scmp.lt.s32.totalorder %s20, 0
        %s180 = scalar_select %p179, %s20, 0
        %s181 = scalar_lea.vmem %s2, %s180
      $region20: #{tpu_custom_call.1} parent=11 // pred_fallthru
        _
      // Predicated region
      $region21: #{tpu_custom_call.1} parent=11 // pred_check
        %p182 = pneg %p126
      $region22: #{tpu_custom_call.1} parent=11 // pred_check_branch
        %184 = sbr.rel (%p182) target = $region24
      $region23: #{tpu_custom_call.1} parent=11 // pred_region
        %p185 = scmp.lt.s32.totalorder %s20, 0
        %s186 = scalar_select %p185, %s20, 0
        %s187 = scalar_lea.vmem %s3, %s186
      $region24: #{tpu_custom_call.1} parent=11 // pred_fallthru
        _
    $region12: #{tpu_custom_call.1} parent=5 // pred_fallthru
      _
    %p188 = scmp.lt.s32.totalorder %s10, 8
    // Predicated region
    $region25: #{tpu_custom_call.1} parent=5 // pred_check
      %p189 = pneg %p188
    $region26: #{tpu_custom_call.1} parent=5 // pred_check_branch
      %191 = sbr.rel (%p189) target = $region28
    $region27: #{tpu_custom_call.1} parent=5 // pred_region
      // Predicated region
      $region29: #{tpu_custom_call.1} parent=27 // pred_check
        %p192 = pneg %p42
      $region30: #{tpu_custom_call.1} parent=27 // pred_check_branch
        %194 = sbr.rel (%p192) target = $region32
      $region31: #{tpu_custom_call.1} parent=27 // pred_region
        %p195 = scmp.lt.s32.totalorder %s17, 7
        %s196 = scalar_select %p195, %s17, 7
        %s197 = smul.addr %s196, 10
        %s198 = smul.addr %s197, 4
        %s199 = scalar_lea.vmem %s0, %s198
      $region32: #{tpu_custom_call.1} parent=27 // pred_fallthru
        _
    $region28: #{tpu_custom_call.1} parent=5 // pred_fallthru
      _
    %p200 = scmp.le.s32.totalorder 1, %s10
    %p201 = scmp.lt.s32.totalorder %s10, 9
    %p202 = pnand %p200, %p201
    %p203 = pneg %p202
    // Predicated region
    $region33: #{tpu_custom_call.1} parent=5 // pred_check
      _
    $region34: #{tpu_custom_call.1} parent=5 // pred_check_branch
      %205 = sbr.rel (%p202) target = $region36
    $region35: #{tpu_custom_call.1} parent=5 // pred_region
      %s206 = ssub.s32 %s10, 1
      %p207 = scmp.lt.s32.totalorder %s19, 7
      %s208 = scalar_select %p207, %s19, 7
      %s209 = smul.addr %s208, 10
      %s210 = smul.addr %s209, 4
      %s211 = scalar_lea.vmem %s0, %s210
      %p212 = pneg %p48
      %p213 = pneg %p45
      %p214 = scmp.lt.s32.totalorder %s20, 0
      %s215 = scalar_select %p214, %s20, 0
      %s216 = smul.addr %s215, 4
      %s217 = scalar_lea.vmem %s1, %s216
      %p218 = pneg %p74
      %p219 = pneg %p71
      %p220 = scmp.lt.s32.totalorder %s20, 0
      %s221 = scalar_select %p220, %s20, 0
      %s222 = scalar_lea.vmem %s2, %s221
      %p223 = pneg %p100
      %p224 = pneg %p97
      %p225 = scmp.lt.s32.totalorder %s20, 0
      %s226 = scalar_select %p225, %s20, 0
      %s227 = scalar_lea.vmem %s3, %s226
      %p228 = pneg %p126
      %p229 = pneg %p123
      %p230 = pneg %p154
      %p231 = pneg %p151
      %p232 = scmp.lt.s32.totalorder %s19, 7
      %s233 = scalar_select %p232, %s19, 7
      %p234 = scmp.lt.s32.totalorder %s20, 0
      %s235 = scalar_select %p234, %s20, 0
      %s236 = smul.addr %s233, 5
      %s237 = sadd.s32 %s235, %s236
      %s238 = smul.addr %s237, 4
      %s239 = scalar_lea.vmem %s4, %s238
      %p240 = scmp.lt.s32.totalorder %s19, 7
      %s241 = scalar_select %p240, %s19, 7
      %s242 = smul.addr %s241, 10
      %s243 = smul.addr %s242, 4
      %s244 = scalar_lea.vmem %s0, %s243
      %p245 = scmp.lt.s32.totalorder %s20, 0
      %s246 = scalar_select %p245, %s20, 0
      %s247 = smul.addr %s246, 4
      %s248 = scalar_lea.vmem %s1, %s247
      %p249 = scmp.lt.s32.totalorder %s20, 0
      %s250 = scalar_select %p249, %s20, 0
      %s251 = scalar_lea.vmem %s2, %s250
      %p252 = scmp.lt.s32.totalorder %s20, 0
      %s253 = scalar_select %p252, %s20, 0
      %s254 = scalar_lea.vmem %s3, %s253
      %p255 = scmp.lt.s32.totalorder %s19, 7
      %s256 = scalar_select %p255, %s19, 7
      %p257 = scmp.lt.s32.totalorder %s20, 0
      %s258 = scalar_select %p257, %s20, 0
      %s259 = smul.addr %s256, 5
      %s260 = sadd.s32 %s258, %s259
      %s261 = smul.addr %s260, 4
      %s262 = scalar_lea.vmem %s4, %s261
      %v264 = vld [vmem:[%s244] sm:$0xf]
      %v265 = vld [vmem:[%s244 + $0x4] sm:$0xf]
      %v266 = vld [vmem:[%s244 + $0x8] sm:$0xf]
      %v267 = vld [vmem:[%s244 + $0xc] sm:$0xf]
      %v268 = vld [vmem:[%s244 + $0x10] sm:$0x3]
      %v269 = vld [vmem:[%s248] sm:$0xf]
      %v270 = vld [vmem:[%s248 + $0x4] sm:$0xf]
      %v271 = vld [vmem:[%s248 + $0x8] sm:$0xf]
      %v272 = vld [vmem:[%s248 + $0xc] sm:$0xf]
      %v273 = vld [vmem:[%s248 + $0x10] sm:$0xf]
      %v274 = vld [vmem:[%s248 + $0x14] sm:$0xf]
      %v275 = vld [vmem:[%s248 + $0x18] sm:$0xf]
      %v276 = vld [vmem:[%s248 + $0x1c] sm:$0xf]
      %v282 = vunpack.c.l.b16 %v264
      %v283 = vunpack.c.l.b16 %v265
      %v284 = vunpack.c.l.b16 %v266
      %v285 = vunpack.c.l.b16 %v267
      %v286 = vunpack.c.l.b16 %v268
      %v287 = vpack.c.b16 %v283, %v282
      %v288 = vpack.c.b16 %v285, %v284
      %v289 = vpack.c.b16 %v286, %v286
      %v298 = vunpack.c.l.b16 %v269
      %v299 = vunpack.c.l.b16 %v270
      %v300 = vunpack.c.l.b16 %v271
      %v301 = vunpack.c.l.b16 %v272
      %v302 = vunpack.c.l.b16 %v273
      %v303 = vunpack.c.l.b16 %v274
      %v304 = vunpack.c.l.b16 %v275
      %v305 = vunpack.c.l.b16 %v276
      %v306 = vpack.c.b16 %v299, %v298
      %v307 = vpack.c.b16 %v301, %v300
      %v308 = vpack.c.b16 %v303, %v302
      %v309 = vpack.c.b16 %v305, %v304
      %vm314 = vcmask 523264
      %v316 = vsel %vm314, %v287, 0
      %v319 = vsel %vm314, %v288, 0
      %v322 = vsel %vm314, %v289, 0
      %324 = vmatprep.subr.bf16.mxu0 0
      %325 = vmatpush1.bf16.msra.mxu0 0
      %326 = vmatprep.subr.bf16.mxu0 0
      %327 = vmatpush1.bf16.msra.mxu0 0
      %328 = vmatprep.subr.bf16.mxu0 0
      %329 = vmatpush1.bf16.msra.mxu0 0
      %330 = vmatprep.subr.bf16.mxu0 0
      %331 = vmatpush1.bf16.msra.mxu0 0
      %332 = vmatprep.subr.bf16.mxu0 0
      %333 = vmatpush1.bf16.msra.mxu0 %v309
      %334 = vmatprep.subr.bf16.mxu0 0
      %335 = vmatpush1.bf16.msra.mxu0 %v308
      %336 = vmatprep.subr.bf16.mxu0 0
      %337 = vmatpush1.bf16.msra.mxu0 %v307
      %338 = vmatprep.subr.bf16.mxu0 0
      %339 = vmatpush1.bf16.msra.mxu0 %v306
      %340 = vmatprep.subr.bf16.mxu0 0
      %341 = vmatpush2.bf16.msra.mxu0 0
      %342 = vmatprep.subr.bf16.mxu0 0
      %343 = vmatpush2.bf16.msra.mxu0 0
      %344 = vmatprep.subr.bf16.mxu0 0
      %345 = vmatpush2.bf16.msra.mxu0 0
      %346 = vmatprep.subr.bf16.mxu0 0
      %347 = vmatpush2.bf16.msra.mxu0 0
      %348 = vmatprep.subr.bf16.mxu0 0
      %349 = vmatpush2.bf16.msra.mxu0 0
      %350 = vmatprep.subr.bf16.mxu0 0
      %351 = vmatpush2.bf16.msra.mxu0 0
      %352 = vmatprep.subr.bf16.mxu0 0
      %353 = vmatpush2.bf16.msra.mxu0 0
      %354 = vmatprep.subr.bf16.mxu0 0
      %355 = vmatpush2.bf16.msra.mxu0 0
      %356 = vmatprep.mubr.bf16.mxu0 0
      %357 = vmatmul.mubr.bf16.gmra.mxu0 %v316
      %v358 = vpop.f32.mrf.mxu0
      %v359 = vadd.f32 0.0, %v358
      %v360 = vpop.f32.mrf.mxu0
      %v361 = vpop.f32.mrf.mxu0
      %v362 = vadd.f32 0.0, %v361
      %v363 = vpop.f32.mrf.mxu0
      %364 = vmatprep.mubr.bf16.mxu0 0
      %365 = vmatmul.mubr.bf16.gmra.mxu0 %v319
      %v366 = vpop.f32.mrf.mxu0
      %v367 = vadd.f32 0.0, %v366
      %v368 = vpop.f32.mrf.mxu0
      %v369 = vpop.f32.mrf.mxu0
      %v370 = vadd.f32 0.0, %v369
      %v371 = vpop.f32.mrf.mxu0
      %372 = vmatprep.mubr.bf16.mxu0 0
      %373 = vmatmul.mubr.bf16.gmra.mxu0 %v322
      %v374 = vpop.f32.mrf.mxu0
      %v375 = vadd.f32 0.0, %v374
      %v376 = vpop.f32.mrf.mxu0
      %v377 = vpop.f32.mrf.mxu0
      %v378 = vpop.f32.mrf.mxu0
      %379 = vdwg.mxu0
      %380 = vst [vmem:[#allocation2] sm:$0xff] %v359
      %381 = vst [vmem:[#allocation2 + $0x8] sm:$0xff] %v362
      %382 = vst [vmem:[#allocation2 + $0x10] sm:$0xff] %v367
      %383 = vst [vmem:[#allocation2 + $0x18] sm:$0xff] %v370
      %384 = vst [vmem:[#allocation2 + $0x20] sm:$0xf] %v375
      %v385 = vld [vmem:[%s244] sm:$0xf]
      %v386 = vld [vmem:[%s244 + $0x4] sm:$0xf]
      %v387 = vld [vmem:[%s244 + $0x8] sm:$0xf]
      %v388 = vld [vmem:[%s244 + $0xc] sm:$0xf]
      %v389 = vld [vmem:[%s244 + $0x10] sm:$0x7]
      %s390 = scalar_lea.vmem %s248, 32
      %v391 = vld [vmem:[%s390] sm:$0xf]
      %v392 = vld [vmem:[%s390 + $0x4] sm:$0xf]
      %v393 = vld [vmem:[%s390 + $0x8] sm:$0xf]
      %v394 = vld [vmem:[%s390 + $0xc] sm:$0xf]
      %v395 = vld [vmem:[%s390 + $0x10] sm:$0xf]
      %v396 = vld [vmem:[%s390 + $0x14] sm:$0xf]
      %v397 = vld [vmem:[%s390 + $0x18] sm:$0xf]
      %v398 = vld [vmem:[%s390 + $0x1c] sm:$0xf]
      %v404 = vunpack.c.l.b16 %v385
      %v405 = vunpack.c.l.b16 %v386
      %v406 = vunpack.c.l.b16 %v387
      %v407 = vunpack.c.l.b16 %v388
      %v408 = vunpack.c.l.b16 %v389
      %v409 = vpack.c.b16 %v405, %v404
      %v410 = vpack.c.b16 %v407, %v406
      %v411 = vpack.c.b16 %v408, %v408
      %vm412 = vsmask.f32 7424
      %v414 = vshrl.u32 %v409, 16
      %v416 = vshll.u32 %v409, 16
      %v418 = vrot.slane %v416, 1
      %v419 = vor.u32 %v414, %v418
      %v421 = vshll.u32 %v410, 16
      %v423 = vrot.slane %v421, 1
      %v424 = vsel %vm412, %v419, %v423
      %v425 = vshrl.u32 %v410, 16
      %v427 = vor.u32 %v425, %v423
      %v429 = vshll.u32 %v411, 16
      %v431 = vrot.slane %v429, 1
      %v432 = vsel %vm412, %v427, %v431
      %v433 = vshrl.u32 %v411, 16
      %v435 = vor.u32 %v433, %v431
      %v444 = vunpack.c.l.b16 %v391
      %v445 = vunpack.c.l.b16 %v392
      %v446 = vunpack.c.l.b16 %v393
      %v447 = vunpack.c.l.b16 %v394
      %v448 = vunpack.c.l.b16 %v395
      %v449 = vunpack.c.l.b16 %v396
      %v450 = vunpack.c.l.b16 %v397
      %v451 = vunpack.c.l.b16 %v398
      %v452 = vpack.c.b16 %v445, %v444
      %v453 = vpack.c.b16 %v447, %v446
      %v454 = vpack.c.b16 %v449, %v448
      %v455 = vpack.c.b16 %v451, %v450
      %v461 = vsel %vm314, %v424, 0
      %v464 = vsel %vm314, %v432, 0
      %v467 = vsel %vm314, %v435, 0
      %469 = vmatprep.subr.bf16.mxu0 0
      %470 = vmatpush1.bf16.msra.mxu0 0
      %471 = vmatprep.subr.bf16.mxu0 0
      %472 = vmatpush1.bf16.msra.mxu0 0
      %473 = vmatprep.subr.bf16.mxu0 0
      %474 = vmatpush1.bf16.msra.mxu0 0
      %475 = vmatprep.subr.bf16.mxu0 0
      %476 = vmatpush1.bf16.msra.mxu0 0
      %477 = vmatprep.subr.bf16.mxu0 0
      %478 = vmatpush1.bf16.msra.mxu0 %v455
      %479 = vmatprep.subr.bf16.mxu0 0
      %480 = vmatpush1.bf16.msra.mxu0 %v454
      %481 = vmatprep.subr.bf16.mxu0 0
      %482 = vmatpush1.bf16.msra.mxu0 %v453
      %483 = vmatprep.subr.bf16.mxu0 0
      %484 = vmatpush1.bf16.msra.mxu0 %v452
      %485 = vmatprep.subr.bf16.mxu0 0
      %486 = vmatpush2.bf16.msra.mxu0 0
      %487 = vmatprep.subr.bf16.mxu0 0
      %488 = vmatpush2.bf16.msra.mxu0 0
      %489 = vmatprep.subr.bf16.mxu0 0
      %490 = vmatpush2.bf16.msra.mxu0 0
      %491 = vmatprep.subr.bf16.mxu0 0
      %492 = vmatpush2.bf16.msra.mxu0 0
      %493 = vmatprep.subr.bf16.mxu0 0
      %494 = vmatpush2.bf16.msra.mxu0 0
      %495 = vmatprep.subr.bf16.mxu0 0
      %496 = vmatpush2.bf16.msra.mxu0 0
      %497 = vmatprep.subr.bf16.mxu0 0
      %498 = vmatpush2.bf16.msra.mxu0 0
      %499 = vmatprep.subr.bf16.mxu0 0
      %500 = vmatpush2.bf16.msra.mxu0 0
      %501 = vmatprep.mubr.bf16.mxu0 0
      %502 = vmatmul.mubr.bf16.gmra.mxu0 %v461
      %v503 = vpop.f32.mrf.mxu0
      %v504 = vadd.f32 0.0, %v503
      %v505 = vpop.f32.mrf.mxu0
      %v506 = vpop.f32.mrf.mxu0
      %v507 = vadd.f32 0.0, %v506
      %v508 = vpop.f32.mrf.mxu0
      %509 = vmatprep.mubr.bf16.mxu0 0
      %510 = vmatmul.mubr.bf16.gmra.mxu0 %v464
      %v511 = vpop.f32.mrf.mxu0
      %v512 = vadd.f32 0.0, %v511
      %v513 = vpop.f32.mrf.mxu0
      %v514 = vpop.f32.mrf.mxu0
      %v515 = vadd.f32 0.0, %v514
      %v516 = vpop.f32.mrf.mxu0
      %517 = vmatprep.mubr.bf16.mxu0 0
      %518 = vmatmul.mubr.bf16.gmra.mxu0 %v467
      %v519 = vpop.f32.mrf.mxu0
      %v520 = vadd.f32 0.0, %v519
      %v521 = vpop.f32.mrf.mxu0
      %v522 = vpop.f32.mrf.mxu0
      %v523 = vpop.f32.mrf.mxu0
      %524 = vdwg.mxu0
      %v525 = vld [vmem:[#allocation2] sm:$0xff]
      %v526 = vld [vmem:[#allocation2 + $0x8] sm:$0xff]
      %v527 = vld [vmem:[#allocation2 + $0x10] sm:$0xff]
      %v528 = vld [vmem:[#allocation2 + $0x18] sm:$0xff]
      %v529 = vld [vmem:[#allocation2 + $0x20] sm:$0xf]
      %v530 = vadd.f32 %v525, %v504
      %v531 = vadd.f32 %v526, %v507
      %v532 = vadd.f32 %v527, %v512
      %v533 = vadd.f32 %v528, %v515
      %v534 = vadd.f32 %v529, %v520
      %535 = vst [vmem:[#allocation2] sm:$0xff] %v530
      %536 = vst [vmem:[#allocation2 + $0x8] sm:$0xff] %v531
      %537 = vst [vmem:[#allocation2 + $0x10] sm:$0xff] %v532
      %538 = vst [vmem:[#allocation2 + $0x18] sm:$0xff] %v533
      %539 = vst [vmem:[#allocation2 + $0x20] sm:$0xf] %v534
      %v540 = vld [vmem:[%s244] sm:$0xe]
      %v541 = vld [vmem:[%s244 + $0x4] sm:$0xf]
      %v542 = vld [vmem:[%s244 + $0x8] sm:$0xf]
      %v543 = vld [vmem:[%s244 + $0xc] sm:$0xf]
      %v544 = vld [vmem:[%s244 + $0x10] sm:$0x7]
      %s545 = scalar_lea.vmem %s248, 64
      %v546 = vld [vmem:[%s545] sm:$0xf]
      %v547 = vld [vmem:[%s545 + $0x4] sm:$0xf]
      %v548 = vld [vmem:[%s545 + $0x8] sm:$0xf]
      %v549 = vld [vmem:[%s545 + $0xc] sm:$0xf]
      %v550 = vld [vmem:[%s545 + $0x10] sm:$0xf]
      %v551 = vld [vmem:[%s545 + $0x14] sm:$0xf]
      %v552 = vld [vmem:[%s545 + $0x18] sm:$0xf]
      %v553 = vld [vmem:[%s545 + $0x1c] sm:$0xf]
      %v559 = vunpack.c.l.b16 %v540
      %v560 = vunpack.c.l.b16 %v541
      %v561 = vunpack.c.l.b16 %v542
      %v562 = vunpack.c.l.b16 %v543
      %v563 = vunpack.c.l.b16 %v544
      %v564 = vpack.c.b16 %v560, %v559
      %v565 = vpack.c.b16 %v562, %v561
      %v566 = vpack.c.b16 %v563, %v563
      %vm567 = vcmask 1046528
      %v568 = vrot.slane %v564, 1
      %v569 = vrot.slane %v565, 1
      %v570 = vsel %vm567, %v568, %v569
      %v571 = vrot.slane %v566, 1
      %v572 = vsel %vm567, %v569, %v571
      %v581 = vunpack.c.l.b16 %v546
      %v582 = vunpack.c.l.b16 %v547
      %v583 = vunpack.c.l.b16 %v548
      %v584 = vunpack.c.l.b16 %v549
      %v585 = vunpack.c.l.b16 %v550
      %v586 = vunpack.c.l.b16 %v551
      %v587 = vunpack.c.l.b16 %v552
      %v588 = vunpack.c.l.b16 %v553
      %v589 = vpack.c.b16 %v582, %v581
      %v590 = vpack.c.b16 %v584, %v583
      %v591 = vpack.c.b16 %v586, %v585
      %v592 = vpack.c.b16 %v588, %v587
      %v598 = vsel %vm314, %v570, 0
      %v601 = vsel %vm314, %v572, 0
      %v604 = vsel %vm314, %v571, 0
      %606 = vmatprep.subr.bf16.mxu0 0
      %607 = vmatpush1.bf16.msra.mxu0 0
      %608 = vmatprep.subr.bf16.mxu0 0
      %609 = vmatpush1.bf16.msra.mxu0 0
      %610 = vmatprep.subr.bf16.mxu0 0
      %611 = vmatpush1.bf16.msra.mxu0 0
      %612 = vmatprep.subr.bf16.mxu0 0
      %613 = vmatpush1.bf16.msra.mxu0 0
      %614 = vmatprep.subr.bf16.mxu0 0
      %615 = vmatpush1.bf16.msra.mxu0 %v592
      %616 = vmatprep.subr.bf16.mxu0 0
      %617 = vmatpush1.bf16.msra.mxu0 %v591
      %618 = vmatprep.subr.bf16.mxu0 0
      %619 = vmatpush1.bf16.msra.mxu0 %v590
      %620 = vmatprep.subr.bf16.mxu0 0
      %621 = vmatpush1.bf16.msra.mxu0 %v589
      %622 = vmatprep.subr.bf16.mxu0 0
      %623 = vmatpush2.bf16.msra.mxu0 0
      %624 = vmatprep.subr.bf16.mxu0 0
      %625 = vmatpush2.bf16.msra.mxu0 0
      %626 = vmatprep.subr.bf16.mxu0 0
      %627 = vmatpush2.bf16.msra.mxu0 0
      %628 = vmatprep.subr.bf16.mxu0 0
      %629 = vmatpush2.bf16.msra.mxu0 0
      %630 = vmatprep.subr.bf16.mxu0 0
      %631 = vmatpush2.bf16.msra.mxu0 0
      %632 = vmatprep.subr.bf16.mxu0 0
      %633 = vmatpush2.bf16.msra.mxu0 0
      %634 = vmatprep.subr.bf16.mxu0 0
      %635 = vmatpush2.bf16.msra.mxu0 0
      %636 = vmatprep.subr.bf16.mxu0 0
      %637 = vmatpush2.bf16.msra.mxu0 0
      %638 = vmatprep.mubr.bf16.mxu0 0
      %639 = vmatmul.mubr.bf16.gmra.mxu0 %v598
      %v640 = vpop.f32.mrf.mxu0
      %v641 = vadd.f32 0.0, %v640
      %v642 = vpop.f32.mrf.mxu0
      %v643 = vpop.f32.mrf.mxu0
      %v644 = vadd.f32 0.0, %v643
      %v645 = vpop.f32.mrf.mxu0
      %646 = vmatprep.mubr.bf16.mxu0 0
      %647 = vmatmul.mubr.bf16.gmra.mxu0 %v601
      %v648 = vpop.f32.mrf.mxu0
      %v649 = vadd.f32 0.0, %v648
      %v650 = vpop.f32.mrf.mxu0
      %v651 = vpop.f32.mrf.mxu0
      %v652 = vadd.f32 0.0, %v651
      %v653 = vpop.f32.mrf.mxu0
      %654 = vmatprep.mubr.bf16.mxu0 0
      %655 = vmatmul.mubr.bf16.gmra.mxu0 %v604
      %v656 = vpop.f32.mrf.mxu0
      %v657 = vadd.f32 0.0, %v656
      %v658 = vpop.f32.mrf.mxu0
      %v659 = vpop.f32.mrf.mxu0
      %v660 = vpop.f32.mrf.mxu0
      %661 = vdwg.mxu0
      %v662 = vld [vmem:[#allocation2] sm:$0xff]
      %v663 = vld [vmem:[#allocation2 + $0x8] sm:$0xff]
      %v664 = vld [vmem:[#allocation2 + $0x10] sm:$0xff]
      %v665 = vld [vmem:[#allocation2 + $0x18] sm:$0xff]
      %v666 = vld [vmem:[#allocation2 + $0x20] sm:$0xf]
      %v667 = vadd.f32 %v662, %v641
      %v668 = vadd.f32 %v663, %v644
      %v669 = vadd.f32 %v664, %v649
      %v670 = vadd.f32 %v665, %v652
      %v671 = vadd.f32 %v666, %v657
      %672 = vst [vmem:[#allocation2] sm:$0xff] %v667
      %673 = vst [vmem:[#allocation2 + $0x8] sm:$0xff] %v668
      %674 = vst [vmem:[#allocation2 + $0x10] sm:$0xff] %v669
      %675 = vst [vmem:[#allocation2 + $0x18] sm:$0xff] %v670
      %676 = vst [vmem:[#allocation2 + $0x20] sm:$0xf] %v671
      %v677 = vld [vmem:[%s244 + $0x8] sm:$0xe]
      %v678 = vld [vmem:[%s244 + $0xc] sm:$0xf]
      %v679 = vld [vmem:[%s244 + $0x10] sm:$0xf]
      %v680 = vld [vmem:[%s244 + $0x14] sm:$0xf]
      %v681 = vld [vmem:[%s244 + $0x18] sm:$0x7]
      %s682 = scalar_lea.vmem %s248, 96
      %v683 = vld [vmem:[%s682] sm:$0xf]
      %v684 = vld [vmem:[%s682 + $0x4] sm:$0xf]
      %v685 = vld [vmem:[%s682 + $0x8] sm:$0xf]
      %v686 = vld [vmem:[%s682 + $0xc] sm:$0xf]
      %v687 = vld [vmem:[%s682 + $0x10] sm:$0xf]
      %v688 = vld [vmem:[%s682 + $0x14] sm:$0xf]
      %v689 = vld [vmem:[%s682 + $0x18] sm:$0xf]
      %v690 = vld [vmem:[%s682 + $0x1c] sm:$0xf]
      %v696 = vunpack.c.l.b16 %v677
      %v697 = vunpack.c.l.b16 %v678
      %v698 = vunpack.c.l.b16 %v679
      %v699 = vunpack.c.l.b16 %v680
      %v700 = vunpack.c.l.b16 %v681
      %v701 = vpack.c.b16 %v697, %v696
      %v702 = vpack.c.b16 %v699, %v698
      %v703 = vpack.c.b16 %v700, %v700
      %v704 = vrot.slane %v701, 1
      %v705 = vrot.slane %v702, 1
      %v706 = vsel %vm567, %v704, %v705
      %v707 = vrot.slane %v703, 1
      %v708 = vsel %vm567, %v705, %v707
      %v717 = vunpack.c.l.b16 %v683
      %v718 = vunpack.c.l.b16 %v684
      %v719 = vunpack.c.l.b16 %v685
      %v720 = vunpack.c.l.b16 %v686
      %v721 = vunpack.c.l.b16 %v687
      %v722 = vunpack.c.l.b16 %v688
      %v723 = vunpack.c.l.b16 %v689
      %v724 = vunpack.c.l.b16 %v690
      %v725 = vpack.c.b16 %v718, %v717
      %v726 = vpack.c.b16 %v720, %v719
      %v727 = vpack.c.b16 %v722, %v721
      %v728 = vpack.c.b16 %v724, %v723
      %v734 = vsel %vm314, %v706, 0
      %v737 = vsel %vm314, %v708, 0
      %v740 = vsel %vm314, %v707, 0
      %742 = vmatprep.subr.bf16.mxu0 0
      %743 = vmatpush1.bf16.msra.mxu0 0
      %744 = vmatprep.subr.bf16.mxu0 0
      %745 = vmatpush1.bf16.msra.mxu0 0
      %746 = vmatprep.subr.bf16.mxu0 0
      %747 = vmatpush1.bf16.msra.mxu0 0
      %748 = vmatprep.subr.bf16.mxu0 0
      %749 = vmatpush1.bf16.msra.mxu0 0
      %750 = vmatprep.subr.bf16.mxu0 0
      %751 = vmatpush1.bf16.msra.mxu0 %v728
      %752 = vmatprep.subr.bf16.mxu0 0
      %753 = vmatpush1.bf16.msra.mxu0 %v727
      %754 = vmatprep.subr.bf16.mxu0 0
      %755 = vmatpush1.bf16.msra.mxu0 %v726
      %756 = vmatprep.subr.bf16.mxu0 0
      %757 = vmatpush1.bf16.msra.mxu0 %v725
      %758 = vmatprep.subr.bf16.mxu0 0
      %759 = vmatpush2.bf16.msra.mxu0 0
      %760 = vmatprep.subr.bf16.mxu0 0
      %761 = vmatpush2.bf16.msra.mxu0 0
      %762 = vmatprep.subr.bf16.mxu0 0
      %763 = vmatpush2.bf16.msra.mxu0 0
      %764 = vmatprep.subr.bf16.mxu0 0
      %765 = vmatpush2.bf16.msra.mxu0 0
      %766 = vmatprep.subr.bf16.mxu0 0
      %767 = vmatpush2.bf16.msra.mxu0 0
      %768 = vmatprep.subr.bf16.mxu0 0
      %769 = vmatpush2.bf16.msra.mxu0 0
      %770 = vmatprep.subr.bf16.mxu0 0
      %771 = vmatpush2.bf16.msra.mxu0 0
      %772 = vmatprep.subr.bf16.mxu0 0
      %773 = vmatpush2.bf16.msra.mxu0 0
      %774 = vmatprep.mubr.bf16.mxu0 0
      %775 = vmatmul.mubr.bf16.gmra.mxu0 %v734
      %v776 = vpop.f32.mrf.mxu0
      %v777 = vadd.f32 0.0, %v776
      %v778 = vpop.f32.mrf.mxu0
      %v779 = vpop.f32.mrf.mxu0
      %v780 = vadd.f32 0.0, %v779
      %v781 = vpop.f32.mrf.mxu0
      %782 = vmatprep.mubr.bf16.mxu0 0
      %783 = vmatmul.mubr.bf16.gmra.mxu0 %v737
      %v784 = vpop.f32.mrf.mxu0
      %v785 = vadd.f32 0.0, %v784
      %v786 = vpop.f32.mrf.mxu0
      %v787 = vpop.f32.mrf.mxu0
      %v788 = vadd.f32 0.0, %v787
      %v789 = vpop.f32.mrf.mxu0
      %790 = vmatprep.mubr.bf16.mxu0 0
      %791 = vmatmul.mubr.bf16.gmra.mxu0 %v740
      %v792 = vpop.f32.mrf.mxu0
      %v793 = vadd.f32 0.0, %v792
      %v794 = vpop.f32.mrf.mxu0
      %v795 = vpop.f32.mrf.mxu0
      %v796 = vpop.f32.mrf.mxu0
      %797 = vdwg.mxu0
      %v798 = vld [vmem:[#allocation2] sm:$0xff]
      %v799 = vld [vmem:[#allocation2 + $0x8] sm:$0xff]
      %v800 = vld [vmem:[#allocation2 + $0x10] sm:$0xff]
      %v801 = vld [vmem:[#allocation2 + $0x18] sm:$0xff]
      %v802 = vld [vmem:[#allocation2 + $0x20] sm:$0xf]
      %v803 = vadd.f32 %v798, %v777
      %v804 = vadd.f32 %v799, %v780
      %v805 = vadd.f32 %v800, %v785
      %v806 = vadd.f32 %v801, %v788
      %v807 = vadd.f32 %v802, %v793
      %808 = vst [vmem:[#allocation2] sm:$0xff] %v803
      %809 = vst [vmem:[#allocation2 + $0x8] sm:$0xff] %v804
      %810 = vst [vmem:[#allocation2 + $0x10] sm:$0xff] %v805
      %811 = vst [vmem:[#allocation2 + $0x18] sm:$0xff] %v806
      %812 = vst [vmem:[#allocation2 + $0x20] sm:$0xf] %v807
      %v813 = vld [vmem:[%s244 + $0x8] sm:$0xe]
      %v814 = vld [vmem:[%s244 + $0xc] sm:$0xf]
      %v815 = vld [vmem:[%s244 + $0x10] sm:$0xf]
      %v816 = vld [vmem:[%s244 + $0x14] sm:$0xf]
      %v817 = vld [vmem:[%s244 + $0x18] sm:$0xf]
      %s818 = scalar_lea.vmem %s248, 128
      %v819 = vld [vmem:[%s818] sm:$0xf]
      %v820 = vld [vmem:[%s818 + $0x4] sm:$0xf]
      %v821 = vld [vmem:[%s818 + $0x8] sm:$0xf]
      %v822 = vld [vmem:[%s818 + $0xc] sm:$0xf]
      %v823 = vld [vmem:[%s818 + $0x10] sm:$0xf]
      %v824 = vld [vmem:[%s818 + $0x14] sm:$0xf]
      %v825 = vld [vmem:[%s818 + $0x18] sm:$0xf]
      %v826 = vld [vmem:[%s818 + $0x1c] sm:$0xf]
      %v832 = vunpack.c.l.b16 %v813
      %v833 = vunpack.c.l.b16 %v814
      %v834 = vunpack.c.l.b16 %v815
      %v835 = vunpack.c.l.b16 %v816
      %v836 = vunpack.c.l.b16 %v817
      %v837 = vpack.c.b16 %v833, %v832
      %v838 = vpack.c.b16 %v835, %v834
      %v839 = vpack.c.b16 %v836, %v836
      %vm840 = vsmask.f32 6400
      %v842 = vshrl.u32 %v837, 16
      %v844 = vrot.slane %v842, 1
      %v845 = vshll.u32 %v837, 16
      %v847 = vrot.slane %v845, 2
      %v848 = vor.u32 %v844, %v847
      %v850 = vshrl.u32 %v838, 16
      %v852 = vrot.slane %v850, 1
      %v853 = vshll.u32 %v838, 16
      %v855 = vrot.slane %v853, 2
      %v856 = vor.u32 %v852, %v855
      %v857 = vsel %vm840, %v848, %v856
      %v859 = vshrl.u32 %v839, 16
      %v861 = vrot.slane %v859, 1
      %v862 = vshll.u32 %v839, 16
      %v864 = vrot.slane %v862, 2
      %v865 = vor.u32 %v861, %v864
      %v866 = vsel %vm840, %v856, %v865
      %v875 = vunpack.c.l.b16 %v819
      %v876 = vunpack.c.l.b16 %v820
      %v877 = vunpack.c.l.b16 %v821
      %v878 = vunpack.c.l.b16 %v822
      %v879 = vunpack.c.l.b16 %v823
      %v880 = vunpack.c.l.b16 %v824
      %v881 = vunpack.c.l.b16 %v825
      %v882 = vunpack.c.l.b16 %v826
      %v883 = vpack.c.b16 %v876, %v875
      %v884 = vpack.c.b16 %v878, %v877
      %v885 = vpack.c.b16 %v880, %v879
      %v886 = vpack.c.b16 %v882, %v881
      %v892 = vsel %vm314, %v857, 0
      %v895 = vsel %vm314, %v866, 0
      %v898 = vsel %vm314, %v865, 0
      %900 = vmatprep.subr.bf16.mxu0 0
      %901 = vmatpush1.bf16.msra.mxu0 0
      %902 = vmatprep.subr.bf16.mxu0 0
      %903 = vmatpush1.bf16.msra.mxu0 0
      %904 = vmatprep.subr.bf16.mxu0 0
      %905 = vmatpush1.bf16.msra.mxu0 0
      %906 = vmatprep.subr.bf16.mxu0 0
      %907 = vmatpush1.bf16.msra.mxu0 0
      %908 = vmatprep.subr.bf16.mxu0 0
      %909 = vmatpush1.bf16.msra.mxu0 %v886
      %910 = vmatprep.subr.bf16.mxu0 0
      %911 = vmatpush1.bf16.msra.mxu0 %v885
      %912 = vmatprep.subr.bf16.mxu0 0
      %913 = vmatpush1.bf16.msra.mxu0 %v884
      %914 = vmatprep.subr.bf16.mxu0 0
      %915 = vmatpush1.bf16.msra.mxu0 %v883
      %916 = vmatprep.subr.bf16.mxu0 0
      %917 = vmatpush2.bf16.msra.mxu0 0
      %918 = vmatprep.subr.bf16.mxu0 0
      %919 = vmatpush2.bf16.msra.mxu0 0
      %920 = vmatprep.subr.bf16.mxu0 0
      %921 = vmatpush2.bf16.msra.mxu0 0
      %922 = vmatprep.subr.bf16.mxu0 0
      %923 = vmatpush2.bf16.msra.mxu0 0
      %924 = vmatprep.subr.bf16.mxu0 0
      %925 = vmatpush2.bf16.msra.mxu0 0
      %926 = vmatprep.subr.bf16.mxu0 0
      %927 = vmatpush2.bf16.msra.mxu0 0
      %928 = vmatprep.subr.bf16.mxu0 0
      %929 = vmatpush2.bf16.msra.mxu0 0
      %930 = vmatprep.subr.bf16.mxu0 0
      %931 = vmatpush2.bf16.msra.mxu0 0
      %932 = vmatprep.mubr.bf16.mxu0 0
      %933 = vmatmul.mubr.bf16.gmra.mxu0 %v892
      %v934 = vpop.f32.mrf.mxu0
      %v935 = vadd.f32 0.0, %v934
      %v936 = vpop.f32.mrf.mxu0
      %v937 = vpop.f32.mrf.mxu0
      %v938 = vadd.f32 0.0, %v937
      %v939 = vpop.f32.mrf.mxu0
      %940 = vmatprep.mubr.bf16.mxu0 0
      %941 = vmatmul.mubr.bf16.gmra.mxu0 %v895
      %v942 = vpop.f32.mrf.mxu0
      %v943 = vadd.f32 0.0, %v942
      %v944 = vpop.f32.mrf.mxu0
      %v945 = vpop.f32.mrf.mxu0
      %v946 = vadd.f32 0.0, %v945
      %v947 = vpop.f32.mrf.mxu0
      %948 = vmatprep.mubr.bf16.mxu0 0
      %949 = vmatmul.mubr.bf16.gmra.mxu0 %v898
      %v950 = vpop.f32.mrf.mxu0
      %v951 = vadd.f32 0.0, %v950
      %v952 = vpop.f32.mrf.mxu0
      %v953 = vpop.f32.mrf.mxu0
      %v954 = vpop.f32.mrf.mxu0
      %955 = vdwg.mxu0
      %v956 = vld [vmem:[#allocation2] sm:$0xff]
      %v957 = vld [vmem:[#allocation2 + $0x8] sm:$0xff]
      %v958 = vld [vmem:[#allocation2 + $0x10] sm:$0xff]
      %v959 = vld [vmem:[#allocation2 + $0x18] sm:$0xff]
      %v960 = vld [vmem:[#allocation2 + $0x20] sm:$0xf]
      %v961 = vadd.f32 %v956, %v935
      %v962 = vadd.f32 %v957, %v938
      %v963 = vadd.f32 %v958, %v943
      %v964 = vadd.f32 %v959, %v946
      %v965 = vadd.f32 %v960, %v951
      %966 = vst [vmem:[#allocation2] sm:$0xff] %v961
      %967 = vst [vmem:[#allocation2 + $0x8] sm:$0xff] %v962
      %968 = vst [vmem:[#allocation2 + $0x10] sm:$0xff] %v963
      %969 = vst [vmem:[#allocation2 + $0x18] sm:$0xff] %v964
      %970 = vst [vmem:[#allocation2 + $0x20] sm:$0xf] %v965
      %v971 = vld [vmem:[%s244 + $0x8] sm:$0xc]
      %v972 = vld [vmem:[%s244 + $0xc] sm:$0xf]
      %v973 = vld [vmem:[%s244 + $0x10] sm:$0xf]
      %v974 = vld [vmem:[%s244 + $0x14] sm:$0xf]
      %v975 = vld [vmem:[%s244 + $0x18] sm:$0xf]
      %s976 = scalar_lea.vmem %s248, 160
      %v977 = vld [vmem:[%s976] sm:$0xf]
      %v978 = vld [vmem:[%s976 + $0x4] sm:$0xf]
      %v979 = vld [vmem:[%s976 + $0x8] sm:$0xf]
      %v980 = vld [vmem:[%s976 + $0xc] sm:$0xf]
      %v981 = vld [vmem:[%s976 + $0x10] sm:$0xf]
      %v982 = vld [vmem:[%s976 + $0x14] sm:$0xf]
      %v983 = vld [vmem:[%s976 + $0x18] sm:$0xf]
      %v984 = vld [vmem:[%s976 + $0x1c] sm:$0xf]
      %v990 = vunpack.c.l.b16 %v971
      %v991 = vunpack.c.l.b16 %v972
      %v992 = vunpack.c.l.b16 %v973
      %v993 = vunpack.c.l.b16 %v974
      %v994 = vunpack.c.l.b16 %v975
      %v995 = vpack.c.b16 %v991, %v990
      %v996 = vpack.c.b16 %v993, %v992
      %v997 = vpack.c.b16 %v994, %v994
      %vm998 = vcmask 1045504
      %v999 = vrot.slane %v995, 2
      %v1000 = vrot.slane %v996, 2
      %v1001 = vsel %vm998, %v999, %v1000
      %v1002 = vrot.slane %v997, 2
      %v1003 = vsel %vm998, %v1000, %v1002
      %v1012 = vunpack.c.l.b16 %v977
      %v1013 = vunpack.c.l.b16 %v978
      %v1014 = vunpack.c.l.b16 %v979
      %v1015 = vunpack.c.l.b16 %v980
      %v1016 = vunpack.c.l.b16 %v981
      %v1017 = vunpack.c.l.b16 %v982
      %v1018 = vunpack.c.l.b16 %v983
      %v1019 = vunpack.c.l.b16 %v984
      %v1020 = vpack.c.b16 %v1013, %v1012
      %v1021 = vpack.c.b16 %v1015, %v1014
      %v1022 = vpack.c.b16 %v1017, %v1016
      %v1023 = vpack.c.b16 %v1019, %v1018
      %v1029 = vsel %vm314, %v1001, 0
      %v1032 = vsel %vm314, %v1003, 0
      %v1035 = vsel %vm314, %v1002, 0
      %1037 = vmatprep.subr.bf16.mxu0 0
      %1038 = vmatpush1.bf16.msra.mxu0 0
      %1039 = vmatprep.subr.bf16.mxu0 0
      %1040 = vmatpush1.bf16.msra.mxu0 0
      %1041 = vmatprep.subr.bf16.mxu0 0
      %1042 = vmatpush1.bf16.msra.mxu0 0
      %1043 = vmatprep.subr.bf16.mxu0 0
      %1044 = vmatpush1.bf16.msra.mxu0 0
      %1045 = vmatprep.subr.bf16.mxu0 0
      %1046 = vmatpush1.bf16.msra.mxu0 %v1023
      %1047 = vmatprep.subr.bf16.mxu0 0
      %1048 = vmatpush1.bf16.msra.mxu0 %v1022
      %1049 = vmatprep.subr.bf16.mxu0 0
      %1050 = vmatpush1.bf16.msra.mxu0 %v1021
      %1051 = vmatprep.subr.bf16.mxu0 0
      %1052 = vmatpush1.bf16.msra.mxu0 %v1020
      %1053 = vmatprep.subr.bf16.mxu0 0
      %1054 = vmatpush2.bf16.msra.mxu0 0
      %1055 = vmatprep.subr.bf16.mxu0 0
      %1056 = vmatpush2.bf16.msra.mxu0 0
      %1057 = vmatprep.subr.bf16.mxu0 0
      %1058 = vmatpush2.bf16.msra.mxu0 0
      %1059 = vmatprep.subr.bf16.mxu0 0
      %1060 = vmatpush2.bf16.msra.mxu0 0
      %1061 = vmatprep.subr.bf16.mxu0 0
      %1062 = vmatpush2.bf16.msra.mxu0 0
      %1063 = vmatprep.subr.bf16.mxu0 0
      %1064 = vmatpush2.bf16.msra.mxu0 0
      %1065 = vmatprep.subr.bf16.mxu0 0
      %1066 = vmatpush2.bf16.msra.mxu0 0
      %1067 = vmatprep.subr.bf16.mxu0 0
      %1068 = vmatpush2.bf16.msra.mxu0 0
      %1069 = vmatprep.mubr.bf16.mxu0 0
      %1070 = vmatmul.mubr.bf16.gmra.mxu0 %v1029
      %v1071 = vpop.f32.mrf.mxu0
      %v1072 = vadd.f32 0.0, %v1071
      %v1073 = vpop.f32.mrf.mxu0
      %v1074 = vpop.f32.mrf.mxu0
      %v1075 = vadd.f32 0.0, %v1074
      %v1076 = vpop.f32.mrf.mxu0
      %1077 = vmatprep.mubr.bf16.mxu0 0
      %1078 = vmatmul.mubr.bf16.gmra.mxu0 %v1032
      %v1079 = vpop.f32.mrf.mxu0
      %v1080 = vadd.f32 0.0, %v1079
      %v1081 = vpop.f32.mrf.mxu0
      %v1082 = vpop.f32.mrf.mxu0
      %v1083 = vadd.f32 0.0, %v1082
      %v1084 = vpop.f32.mrf.mxu0
      %1085 = vmatprep.mubr.bf16.mxu0 0
      %1086 = vmatmul.mubr.bf16.gmra.mxu0 %v1035
      %v1087 = vpop.f32.mrf.mxu0
      %v1088 = vadd.f32 0.0, %v1087
      %v1089 = vpop.f32.mrf.mxu0
      %v1090 = vpop.f32.mrf.mxu0
      %v1091 = vpop.f32.mrf.mxu0
      %1092 = vdwg.mxu0
      %v1093 = vld [vmem:[#allocation2] sm:$0xff]
      %v1094 = vld [vmem:[#allocation2 + $0x8] sm:$0xff]
      %v1095 = vld [vmem:[#allocation2 + $0x10] sm:$0xff]
      %v1096 = vld [vmem:[#allocation2 + $0x18] sm:$0xff]
      %v1097 = vld [vmem:[#allocation2 + $0x20] sm:$0xf]
      %v1098 = vadd.f32 %v1093, %v1072
      %v1099 = vadd.f32 %v1094, %v1075
      %v1100 = vadd.f32 %v1095, %v1080
      %v1101 = vadd.f32 %v1096, %v1083
      %v1102 = vadd.f32 %v1097, %v1088
      %1103 = vst [vmem:[#allocation2] sm:$0xff] %v1098
      %1104 = vst [vmem:[#allocation2 + $0x8] sm:$0xff] %v1099
      %1105 = vst [vmem:[#allocation2 + $0x10] sm:$0xff] %v1100
      %1106 = vst [vmem:[#allocation2 + $0x18] sm:$0xff] %v1101
      %1107 = vst [vmem:[#allocation2 + $0x20] sm:$0xf] %v1102
      %v1108 = vld [vmem:[%s244 + $0x10] sm:$0xc]
      %v1109 = vld [vmem:[%s244 + $0x14] sm:$0xf]
      %v1110 = vld [vmem:[%s244 + $0x18] sm:$0xf]
      %v1111 = vld [vmem:[%s244 + $0x1c] sm:$0xf]
      %v1112 = vld [vmem:[%s244 + $0x20] sm:$0xf]
      %s1113 = scalar_lea.vmem %s248, 192
      %v1114 = vld [vmem:[%s1113] sm:$0xf]
      %v1115 = vld [vmem:[%s1113 + $0x4] sm:$0xf]
      %v1116 = vld [vmem:[%s1113 + $0x8] sm:$0xf]
      %v1117 = vld [vmem:[%s1113 + $0xc] sm:$0xf]
      %v1118 = vld [vmem:[%s1113 + $0x10] sm:$0xf]
      %v1119 = vld [vmem:[%s1113 + $0x14] sm:$0xf]
      %v1120 = vld [vmem:[%s1113 + $0x18] sm:$0xf]
      %v1121 = vld [vmem:[%s1113 + $0x1c] sm:$0xf]
      %v1127 = vunpack.c.l.b16 %v1108
      %v1128 = vunpack.c.l.b16 %v1109
      %v1129 = vunpack.c.l.b16 %v1110
      %v1130 = vunpack.c.l.b16 %v1111
      %v1131 = vunpack.c.l.b16 %v1112
      %v1132 = vpack.c.b16 %v1128, %v1127
      %v1133 = vpack.c.b16 %v1130, %v1129
      %v1134 = vpack.c.b16 %v1131, %v1131
      %v1135 = vrot.slane %v1132, 2
      %v1136 = vrot.slane %v1133, 2
      %v1137 = vsel %vm998, %v1135, %v1136
      %v1138 = vrot.slane %v1134, 2
      %v1139 = vsel %vm998, %v1136, %v1138
      %v1148 = vunpack.c.l.b16 %v1114
      %v1149 = vunpack.c.l.b16 %v1115
      %v1150 = vunpack.c.l.b16 %v1116
      %v1151 = vunpack.c.l.b16 %v1117
      %v1152 = vunpack.c.l.b16 %v1118
      %v1153 = vunpack.c.l.b16 %v1119
      %v1154 = vunpack.c.l.b16 %v1120
      %v1155 = vunpack.c.l.b16 %v1121
      %v1156 = vpack.c.b16 %v1149, %v1148
      %v1157 = vpack.c.b16 %v1151, %v1150
      %v1158 = vpack.c.b16 %v1153, %v1152
      %v1159 = vpack.c.b16 %v1155, %v1154
      %v1165 = vsel %vm314, %v1137, 0
      %v1168 = vsel %vm314, %v1139, 0
      %v1171 = vsel %vm314, %v1138, 0
      %1173 = vmatprep.subr.bf16.mxu0 0
      %1174 = vmatpush1.bf16.msra.mxu0 0
      %1175 = vmatprep.subr.bf16.mxu0 0
      %1176 = vmatpush1.bf16.msra.mxu0 0
      %1177 = vmatprep.subr.bf16.mxu0 0
      %1178 = vmatpush1.bf16.msra.mxu0 0
      %1179 = vmatprep.subr.bf16.mxu0 0
      %1180 = vmatpush1.bf16.msra.mxu0 0
      %1181 = vmatprep.subr.bf16.mxu0 0
      %1182 = vmatpush1.bf16.msra.mxu0 %v1159
      %1183 = vmatprep.subr.bf16.mxu0 0
      %1184 = vmatpush1.bf16.msra.mxu0 %v1158
      %1185 = vmatprep.subr.bf16.mxu0 0
      %1186 = vmatpush1.bf16.msra.mxu0 %v1157
      %1187 = vmatprep.subr.bf16.mxu0 0
      %1188 = vmatpush1.bf16.msra.mxu0 %v1156
      %1189 = vmatprep.subr.bf16.mxu0 0
      %1190 = vmatpush2.bf16.msra.mxu0 0
      %1191 = vmatprep.subr.bf16.mxu0 0
      %1192 = vmatpush2.bf16.msra.mxu0 0
      %1193 = vmatprep.subr.bf16.mxu0 0
      %1194 = vmatpush2.bf16.msra.mxu0 0
      %1195 = vmatprep.subr.bf16.mxu0 0
      %1196 = vmatpush2.bf16.msra.mxu0 0
      %1197 = vmatprep.subr.bf16.mxu0 0
      %1198 = vmatpush2.bf16.msra.mxu0 0
      %1199 = vmatprep.subr.bf16.mxu0 0
      %1200 = vmatpush2.bf16.msra.mxu0 0
      %1201 = vmatprep.subr.bf16.mxu0 0
      %1202 = vmatpush2.bf16.msra.mxu0 0
      %1203 = vmatprep.subr.bf16.mxu0 0
      %1204 = vmatpush2.bf16.msra.mxu0 0
      %1205 = vmatprep.mubr.bf16.mxu0 0
      %1206 = vmatmul.mubr.bf16.gmra.mxu0 %v1165
      %v1207 = vpop.f32.mrf.mxu0
      %v1208 = vadd.f32 0.0, %v1207
      %v1209 = vpop.f32.mrf.mxu0
      %v1210 = vpop.f32.mrf.mxu0
      %v1211 = vadd.f32 0.0, %v1210
      %v1212 = vpop.f32.mrf.mxu0
      %1213 = vmatprep.mubr.bf16.mxu0 0
      %1214 = vmatmul.mubr.bf16.gmra.mxu0 %v1168
      %v1215 = vpop.f32.mrf.mxu0
      %v1216 = vadd.f32 0.0, %v1215
      %v1217 = vpop.f32.mrf.mxu0
      %v1218 = vpop.f32.mrf.mxu0
      %v1219 = vadd.f32 0.0, %v1218
      %v1220 = vpop.f32.mrf.mxu0
      %1221 = vmatprep.mubr.bf16.mxu0 0
      %1222 = vmatmul.mubr.bf16.gmra.mxu0 %v1171
      %v1223 = vpop.f32.mrf.mxu0
      %v1224 = vadd.f32 0.0, %v1223
      %v1225 = vpop.f32.mrf.mxu0
      %v1226 = vpop.f32.mrf.mxu0
      %v1227 = vpop.f32.mrf.mxu0
      %1228 = vdwg.mxu0
      %v1229 = vld [vmem:[#allocation2] sm:$0xff]
      %v1230 = vld [vmem:[#allocation2 + $0x8] sm:$0xff]
      %v1231 = vld [vmem:[#allocation2 + $0x10] sm:$0xff]
      %v1232 = vld [vmem:[#allocation2 + $0x18] sm:$0xff]
      %v1233 = vld [vmem:[#allocation2 + $0x20] sm:$0xf]
      %v1234 = vadd.f32 %v1229, %v1208
      %v1235 = vadd.f32 %v1230, %v1211
      %v1236 = vadd.f32 %v1231, %v1216
      %v1237 = vadd.f32 %v1232, %v1219
      %v1238 = vadd.f32 %v1233, %v1224
      %1239 = vst [vmem:[#allocation2] sm:$0xff] %v1234
      %1240 = vst [vmem:[#allocation2 + $0x8] sm:$0xff] %v1235
      %1241 = vst [vmem:[#allocation2 + $0x10] sm:$0xff] %v1236
      %1242 = vst [vmem:[#allocation2 + $0x18] sm:$0xff] %v1237
      %1243 = vst [vmem:[#allocation2 + $0x20] sm:$0xf] %v1238
      %v1244 = vld [vmem:[%s244 + $0x10] sm:$0xc]
      %v1245 = vld [vmem:[%s244 + $0x14] sm:$0xf]
      %v1246 = vld [vmem:[%s244 + $0x18] sm:$0xf]
      %v1247 = vld [vmem:[%s244 + $0x1c] sm:$0xf]
      %v1248 = vld [vmem:[%s244 + $0x20] sm:$0xf]
      %v1249 = vld [vmem:[%s244 + $0x24] sm:$0x1]
      %s1250 = scalar_lea.vmem %s248, 224
      %v1251 = vld [vmem:[%s1250] sm:$0xf]
      %v1252 = vld [vmem:[%s1250 + $0x4] sm:$0xf]
      %v1253 = vld [vmem:[%s1250 + $0x8] sm:$0xf]
      %v1254 = vld [vmem:[%s1250 + $0xc] sm:$0xf]
      %v1255 = vld [vmem:[%s1250 + $0x10] sm:$0xf]
      %v1256 = vld [vmem:[%s1250 + $0x14] sm:$0xf]
      %v1257 = vld [vmem:[%s1250 + $0x18] sm:$0xf]
      %v1258 = vld [vmem:[%s1250 + $0x1c] sm:$0xf]
      %v1265 = vunpack.c.l.b16 %v1244
      %v1266 = vunpack.c.l.b16 %v1245
      %v1267 = vunpack.c.l.b16 %v1246
      %v1268 = vunpack.c.l.b16 %v1247
      %v1269 = vunpack.c.l.b16 %v1248
      %v1270 = vunpack.c.l.b16 %v1249
      %v1271 = vpack.c.b16 %v1266, %v1265
      %v1272 = vpack.c.b16 %v1268, %v1267
      %v1273 = vpack.c.b16 %v1270, %v1269
      %vm1274 = vsmask.f32 5376
      %v1276 = vshrl.u32 %v1271, 16
      %v1278 = vrot.slane %v1276, 2
      %v1279 = vshll.u32 %v1271, 16
      %v1281 = vrot.slane %v1279, 3
      %v1282 = vor.u32 %v1278, %v1281
      %v1284 = vshrl.u32 %v1272, 16
      %v1286 = vrot.slane %v1284, 2
      %v1287 = vshll.u32 %v1272, 16
      %v1289 = vrot.slane %v1287, 3
      %v1290 = vor.u32 %v1286, %v1289
      %v1291 = vsel %vm1274, %v1282, %v1290
      %v1293 = vshrl.u32 %v1273, 16
      %v1295 = vrot.slane %v1293, 2
      %v1296 = vshll.u32 %v1273, 16
      %v1298 = vrot.slane %v1296, 3
      %v1299 = vor.u32 %v1295, %v1298
      %v1300 = vsel %vm1274, %v1290, %v1299
      %v1309 = vunpack.c.l.b16 %v1251
      %v1310 = vunpack.c.l.b16 %v1252
      %v1311 = vunpack.c.l.b16 %v1253
      %v1312 = vunpack.c.l.b16 %v1254
      %v1313 = vunpack.c.l.b16 %v1255
      %v1314 = vunpack.c.l.b16 %v1256
      %v1315 = vunpack.c.l.b16 %v1257
      %v1316 = vunpack.c.l.b16 %v1258
      %v1317 = vpack.c.b16 %v1310, %v1309
      %v1318 = vpack.c.b16 %v1312, %v1311
      %v1319 = vpack.c.b16 %v1314, %v1313
      %v1320 = vpack.c.b16 %v1316, %v1315
      %v1326 = vsel %vm314, %v1291, 0
      %v1329 = vsel %vm314, %v1300, 0
      %v1332 = vsel %vm314, %v1299, 0
      %1334 = vmatprep.subr.bf16.mxu0 0
      %1335 = vmatpush1.bf16.msra.mxu0 0
      %1336 = vmatprep.subr.bf16.mxu0 0
      %1337 = vmatpush1.bf16.msra.mxu0 0
      %1338 = vmatprep.subr.bf16.mxu0 0
      %1339 = vmatpush1.bf16.msra.mxu0 0
      %1340 = vmatprep.subr.bf16.mxu0 0
      %1341 = vmatpush1.bf16.msra.mxu0 0
      %1342 = vmatprep.subr.bf16.mxu0 0
      %1343 = vmatpush1.bf16.msra.mxu0 %v1320
      %1344 = vmatprep.subr.bf16.mxu0 0
      %1345 = vmatpush1.bf16.msra.mxu0 %v1319
      %1346 = vmatprep.subr.bf16.mxu0 0
      %1347 = vmatpush1.bf16.msra.mxu0 %v1318
      %1348 = vmatprep.subr.bf16.mxu0 0
      %1349 = vmatpush1.bf16.msra.mxu0 %v1317
      %1350 = vmatprep.subr.bf16.mxu0 0
      %1351 = vmatpush2.bf16.msra.mxu0 0
      %1352 = vmatprep.subr.bf16.mxu0 0
      %1353 = vmatpush2.bf16.msra.mxu0 0
      %1354 = vmatprep.subr.bf16.mxu0 0
      %1355 = vmatpush2.bf16.msra.mxu0 0
      %1356 = vmatprep.subr.bf16.mxu0 0
      %1357 = vmatpush2.bf16.msra.mxu0 0
      %1358 = vmatprep.subr.bf16.mxu0 0
      %1359 = vmatpush2.bf16.msra.mxu0 0
      %1360 = vmatprep.subr.bf16.mxu0 0
      %1361 = vmatpush2.bf16.msra.mxu0 0
      %1362 = vmatprep.subr.bf16.mxu0 0
      %1363 = vmatpush2.bf16.msra.mxu0 0
      %1364 = vmatprep.subr.bf16.mxu0 0
      %1365 = vmatpush2.bf16.msra.mxu0 0
      %1366 = vmatprep.mubr.bf16.mxu0 0
      %1367 = vmatmul.mubr.bf16.gmra.mxu0 %v1326
      %v1368 = vpop.f32.mrf.mxu0
      %v1369 = vadd.f32 0.0, %v1368
      %v1370 = vpop.f32.mrf.mxu0
      %v1371 = vpop.f32.mrf.mxu0
      %v1372 = vadd.f32 0.0, %v1371
      %v1373 = vpop.f32.mrf.mxu0
      %1374 = vmatprep.mubr.bf16.mxu0 0
      %1375 = vmatmul.mubr.bf16.gmra.mxu0 %v1329
      %v1376 = vpop.f32.mrf.mxu0
      %v1377 = vadd.f32 0.0, %v1376
      %v1378 = vpop.f32.mrf.mxu0
      %v1379 = vpop.f32.mrf.mxu0
      %v1380 = vadd.f32 0.0, %v1379
      %v1381 = vpop.f32.mrf.mxu0
      %1382 = vmatprep.mubr.bf16.mxu0 0
      %1383 = vmatmul.mubr.bf16.gmra.mxu0 %v1332
      %v1384 = vpop.f32.mrf.mxu0
      %v1385 = vadd.f32 0.0, %v1384
      %v1386 = vpop.f32.mrf.mxu0
      %v1387 = vpop.f32.mrf.mxu0
      %v1388 = vpop.f32.mrf.mxu0
      %1389 = vdwg.mxu0
      %v1390 = vld [vmem:[#allocation2] sm:$0xff]
      %v1391 = vld [vmem:[#allocation2 + $0x8] sm:$0xff]
      %v1392 = vld [vmem:[#allocation2 + $0x10] sm:$0xff]
      %v1393 = vld [vmem:[#allocation2 + $0x18] sm:$0xff]
      %v1394 = vld [vmem:[#allocation2 + $0x20] sm:$0xf]
      %v1395 = vadd.f32 %v1390, %v1369
      %v1396 = vadd.f32 %v1391, %v1372
      %v1397 = vadd.f32 %v1392, %v1377
      %v1398 = vadd.f32 %v1393, %v1380
      %v1399 = vadd.f32 %v1394, %v1385
      %1400 = vst [vmem:[#allocation2] sm:$0xff] %v1395
      %1401 = vst [vmem:[#allocation2 + $0x8] sm:$0xff] %v1396
      %1402 = vst [vmem:[#allocation2 + $0x10] sm:$0xff] %v1397
      %1403 = vst [vmem:[#allocation2 + $0x18] sm:$0xff] %v1398
      %1404 = vst [vmem:[#allocation2 + $0x20] sm:$0xf] %v1399
      %v1405 = vld [vmem:[%s244 + $0x10] sm:$0x8]
      %v1406 = vld [vmem:[%s244 + $0x14] sm:$0xf]
      %v1407 = vld [vmem:[%s244 + $0x18] sm:$0xf]
      %v1408 = vld [vmem:[%s244 + $0x1c] sm:$0xf]
      %v1409 = vld [vmem:[%s244 + $0x20] sm:$0xf]
      %v1410 = vld [vmem:[%s244 + $0x24] sm:$0x1]
      %s1411 = scalar_lea.vmem %s248, 256
      %v1412 = vld [vmem:[%s1411] sm:$0xf]
      %v1413 = vld [vmem:[%s1411 + $0x4] sm:$0xf]
      %v1414 = vld [vmem:[%s1411 + $0x8] sm:$0xf]
      %v1415 = vld [vmem:[%s1411 + $0xc] sm:$0xf]
      %v1416 = vld [vmem:[%s1411 + $0x10] sm:$0xf]
      %v1417 = vld [vmem:[%s1411 + $0x14] sm:$0xf]
      %v1418 = vld [vmem:[%s1411 + $0x18] sm:$0xf]
      %v1419 = vld [vmem:[%s1411 + $0x1c] sm:$0xf]
      %v1426 = vunpack.c.l.b16 %v1405
      %v1427 = vunpack.c.l.b16 %v1406
      %v1428 = vunpack.c.l.b16 %v1407
      %v1429 = vunpack.c.l.b16 %v1408
      %v1430 = vunpack.c.l.b16 %v1409
      %v1431 = vunpack.c.l.b16 %v1410
      %v1432 = vpack.c.b16 %v1427, %v1426
      %v1433 = vpack.c.b16 %v1429, %v1428
      %v1434 = vpack.c.b16 %v1431, %v1430
      %vm1435 = vcmask 1044480
      %v1436 = vrot.slane %v1432, 3
      %v1437 = vrot.slane %v1433, 3
      %v1438 = vsel %vm1435, %v1436, %v1437
      %v1439 = vrot.slane %v1434, 3
      %v1440 = vsel %vm1435, %v1437, %v1439
      %v1449 = vunpack.c.l.b16 %v1412
      %v1450 = vunpack.c.l.b16 %v1413
      %v1451 = vunpack.c.l.b16 %v1414
      %v1452 = vunpack.c.l.b16 %v1415
      %v1453 = vunpack.c.l.b16 %v1416
      %v1454 = vunpack.c.l.b16 %v1417
      %v1455 = vunpack.c.l.b16 %v1418
      %v1456 = vunpack.c.l.b16 %v1419
      %v1457 = vpack.c.b16 %v1450, %v1449
      %v1458 = vpack.c.b16 %v1452, %v1451
      %v1459 = vpack.c.b16 %v1454, %v1453
      %v1460 = vpack.c.b16 %v1456, %v1455
      %v1466 = vsel %vm314, %v1438, 0
      %v1469 = vsel %vm314, %v1440, 0
      %v1472 = vsel %vm314, %v1439, 0
      %1474 = vmatprep.subr.bf16.mxu0 0
      %1475 = vmatpush1.bf16.msra.mxu0 0
      %1476 = vmatprep.subr.bf16.mxu0 0
      %1477 = vmatpush1.bf16.msra.mxu0 0
      %1478 = vmatprep.subr.bf16.mxu0 0
      %1479 = vmatpush1.bf16.msra.mxu0 0
      %1480 = vmatprep.subr.bf16.mxu0 0
      %1481 = vmatpush1.bf16.msra.mxu0 0
      %1482 = vmatprep.subr.bf16.mxu0 0
      %1483 = vmatpush1.bf16.msra.mxu0 %v1460
      %1484 = vmatprep.subr.bf16.mxu0 0
      %1485 = vmatpush1.bf16.msra.mxu0 %v1459
      %1486 = vmatprep.subr.bf16.mxu0 0
      %1487 = vmatpush1.bf16.msra.mxu0 %v1458
      %1488 = vmatprep.subr.bf16.mxu0 0
      %1489 = vmatpush1.bf16.msra.mxu0 %v1457
      %1490 = vmatprep.subr.bf16.mxu0 0
      %1491 = vmatpush2.bf16.msra.mxu0 0
      %1492 = vmatprep.subr.bf16.mxu0 0
      %1493 = vmatpush2.bf16.msra.mxu0 0
      %1494 = vmatprep.subr.bf16.mxu0 0
      %1495 = vmatpush2.bf16.msra.mxu0 0
      %1496 = vmatprep.subr.bf16.mxu0 0
      %1497 = vmatpush2.bf16.msra.mxu0 0
      %1498 = vmatprep.subr.bf16.mxu0 0
      %1499 = vmatpush2.bf16.msra.mxu0 0
      %1500 = vmatprep.subr.bf16.mxu0 0
      %1501 = vmatpush2.bf16.msra.mxu0 0
      %1502 = vmatprep.subr.bf16.mxu0 0
      %1503 = vmatpush2.bf16.msra.mxu0 0
      %1504 = vmatprep.subr.bf16.mxu0 0
      %1505 = vmatpush2.bf16.msra.mxu0 0
      %1506 = vmatprep.mubr.bf16.mxu0 0
      %1507 = vmatmul.mubr.bf16.gmra.mxu0 %v1466
      %v1508 = vpop.f32.mrf.mxu0
      %v1509 = vadd.f32 0.0, %v1508
      %v1510 = vpop.f32.mrf.mxu0
      %v1511 = vpop.f32.mrf.mxu0
      %v1512 = vadd.f32 0.0, %v1511
      %v1513 = vpop.f32.mrf.mxu0
      %1514 = vmatprep.mubr.bf16.mxu0 0
      %1515 = vmatmul.mubr.bf16.gmra.mxu0 %v1469
      %v1516 = vpop.f32.mrf.mxu0
      %v1517 = vadd.f32 0.0, %v1516
      %v1518 = vpop.f32.mrf.mxu0
      %v1519 = vpop.f32.mrf.mxu0
      %v1520 = vadd.f32 0.0, %v1519
      %v1521 = vpop.f32.mrf.mxu0
      %1522 = vmatprep.mubr.bf16.mxu0 0
      %1523 = vmatmul.mubr.bf16.gmra.mxu0 %v1472
      %v1524 = vpop.f32.mrf.mxu0
      %v1525 = vadd.f32 0.0, %v1524
      %v1526 = vpop.f32.mrf.mxu0
      %v1527 = vpop.f32.mrf.mxu0
      %v1528 = vpop.f32.mrf.mxu0
      %1529 = vdwg.mxu0
      %v1530 = vld [vmem:[#allocation2] sm:$0xff]
      %v1531 = vld [vmem:[#allocation2 + $0x8] sm:$0xff]
      %v1532 = vld [vmem:[#allocation2 + $0x10] sm:$0xff]
      %v1533 = vld [vmem:[#allocation2 + $0x18] sm:$0xff]
      %v1534 = vld [vmem:[#allocation2 + $0x20] sm:$0xf]
      %v1535 = vadd.f32 %v1530, %v1509
      %v1536 = vadd.f32 %v1531, %v1512
      %v1537 = vadd.f32 %v1532, %v1517
      %v1538 = vadd.f32 %v1533, %v1520
      %v1539 = vadd.f32 %v1534, %v1525
      %1540 = vst [vmem:[#allocation2] sm:$0xff] %v1535
      %1541 = vst [vmem:[#allocation2 + $0x8] sm:$0xff] %v1536
      %1542 = vst [vmem:[#allocation2 + $0x10] sm:$0xff] %v1537
      %1543 = vst [vmem:[#allocation2 + $0x18] sm:$0xff] %v1538
      %1544 = vst [vmem:[#allocation2 + $0x20] sm:$0xf] %v1539
      %v1545 = vld [vmem:[#allocation2] sm:$0xff]
      %v1546 = vld [vmem:[#allocation2 + $0x8] sm:$0xff]
      %v1547 = vld [vmem:[#allocation2 + $0x10] sm:$0xff]
      %v1548 = vld [vmem:[#allocation2 + $0x18] sm:$0xff]
      %v1549 = vld [vmem:[#allocation2 + $0x20] sm:$0xf]
      %v1550 = vld [vmem:[%s251] sm:$0x1]
      %v1552 = vlaneseq
      %v1553 = vshrl.u32 %v1552, 7
      %v1554 = vsub.s32 0, %v1553
      %v1555 = vrot.slane %v1550, %v1554
      %v1557 = vmul.f32 %v1545, %v1555
      %v1558 = vmul.f32 %v1546, %v1555
      %v1559 = vmul.f32 %v1547, %v1555
      %v1560 = vmul.f32 %v1548, %v1555
      %v1561 = vmul.f32 %v1549, %v1555
      %v1562 = vld [vmem:[%s254] sm:$0x1]
      %v1564 = vlaneseq
      %v1565 = vshrl.u32 %v1564, 7
      %v1566 = vsub.s32 0, %v1565
      %v1567 = vrot.slane %v1562, %v1566
      %v1569 = vadd.f32 %v1557, %v1567
      %v1570 = vadd.f32 %v1558, %v1567
      %v1571 = vadd.f32 %v1559, %v1567
      %v1572 = vadd.f32 %v1560, %v1567
      %v1573 = vadd.f32 %v1561, %v1567
      %v1574 = vmax.f32 %v1569, 0.0
      %v1575 = vmax.f32 %v1570, 0.0
      %v1576 = vmax.f32 %v1571, 0.0
      %v1577 = vmax.f32 %v1572, 0.0
      %v1578 = vmax.f32 %v1573, 0.0
      %v1579 = vpack.c.bf16 %v1575, %v1574
      %v1580 = vpack.c.bf16 %v1577, %v1576
      %v1581 = vpack.c.bf16 %v1578, %v1578
      %v1585 = vunpack.c.l.b16 %v1579
      %v1586 = vunpack.c.h.b16 %v1579
      %v1587 = vunpack.c.l.b16 %v1580
      %v1588 = vunpack.c.h.b16 %v1580
      %v1589 = vunpack.c.l.b16 %v1581
      %v1590 = vpack.c.b16 %v1585, %v1585
      %v1591 = vpack.c.b16 %v1586, %v1586
      %v1592 = vpack.c.b16 %v1587, %v1587
      %v1593 = vpack.c.b16 %v1588, %v1588
      %v1594 = vpack.c.b16 %v1589, %v1589
      %1600 = vst [vmem:[%s262] sm:$0xf] %v1590
      %1601 = vst [vmem:[%s262 + $0x4] sm:$0xf] %v1591
      %1602 = vst [vmem:[%s262 + $0x8] sm:$0xf] %v1592
      %1603 = vst [vmem:[%s262 + $0xc] sm:$0xf] %v1593
      %1604 = vst [vmem:[%s262 + $0x10] sm:$0x3] %v1594
      %p1605 = scmp.lt.s32.totalorder %s19, 7
      %s1606 = scalar_select %p1605, %s19, 7
      %p1607 = scmp.lt.s32.totalorder %s20, 0
      %s1608 = scalar_select %p1607, %s20, 0
      %s1609 = smul.addr %s1606, 5
      %s1610 = sadd.s32 %s1608, %s1609
      %s1611 = smul.addr %s1610, 4
      %s1612 = scalar_lea.vmem %s4, %s1611
      // Predicated region
      $region37: #{tpu_custom_call.1} parent=35 // pred_check
        %p1613 = pneg %p151
      $region38: #{tpu_custom_call.1} parent=35 // pred_check_branch
        %1615 = sbr.rel (%p1613) target = $region40
      $region39: #{tpu_custom_call.1} parent=35 // pred_region
        _
      $region40: #{tpu_custom_call.1} parent=35 // pred_fallthru
        _
    $region36: #{tpu_custom_call.1} parent=5 // pred_fallthru
      _
    %p1616 = scmp.le.s32.totalorder 2, %s10
    // Predicated region
    $region41: #{tpu_custom_call.1} parent=5 // pred_check
      %p1617 = pneg %p1616
    $region42: #{tpu_custom_call.1} parent=5 // pred_check_branch
      %1619 = sbr.rel (%p1617) target = $region44
    $region43: #{tpu_custom_call.1} parent=5 // pred_region
      %s1620 = ssub.s32 %s10, 2
      // Predicated region
      $region45: #{tpu_custom_call.1} parent=43 // pred_check
        %p1621 = pneg %p157
      $region46: #{tpu_custom_call.1} parent=43 // pred_check_branch
        %1623 = sbr.rel (%p1621) target = $region48
      $region47: #{tpu_custom_call.1} parent=43 // pred_region
        %p1624 = scmp.lt.s32.totalorder %s21, 7
        %s1625 = scalar_select %p1624, %s21, 7
        %p1626 = scmp.lt.s32.totalorder %s22, 0
        %s1627 = scalar_select %p1626, %s22, 0
        %s1628 = smul.addr %s1625, 5
        %s1629 = sadd.s32 %s1627, %s1628
        %s1630 = smul.addr %s1629, 4
        %s1631 = scalar_lea.vmem %s4, %s1630
      $region48: #{tpu_custom_call.1} parent=43 // pred_fallthru
        _
    $region44: #{tpu_custom_call.1} parent=5 // pred_fallthru
      _
  $region6: #{tpu_custom_call.1} parent=0 // loop_footer
    %s14 = sadd.s32 1, %s10
  $region7: #{tpu_custom_call.1} parent=0 // loop_footer_branch
    %9 = sbr.rel target = $region3
  $region8: #{tpu_custom_call.1} parent=0 // loop_exit
    _

</llo_original>
